<compile_context>
chip_gen: v7x
topology: tpu7x:2x2x1
jax: 0.10.0
libtpu: 0.0.40
codegen_flags: <defaults>
</compile_context>

<pallas_src>
import functools

import jax
import jax.numpy as jnp
from jax.experimental import pallas as pl
from jax.experimental.pallas import tpu as pltpu


def _cdiv(a, b):
    return -(-a // b)


def _round_up(x, m):
    return _cdiv(x, m) * m


# ---------------------------------------------------------------------------
# Kernel bodies
# ---------------------------------------------------------------------------

def _mlp_body(x_ref, w1_ref, b1_ref, w2_ref, b2_ref, w3_ref, b3_ref):
    """Fused MLP math for one batch tile; returns the (tile_b, 1) f32 column."""
    # In-kernel bf16 cast (VPU, hidden under the MXU-bound step) instead of a
    # wrapper-side astype pass that would rewrite all of x in HBM.
    x = x_ref[...].astype(jnp.bfloat16)

    # Layer 1: bf16 MXU matmul, f32 accumulation, f32 bias + ReLU (VPU).
    h1 = jnp.dot(x, w1_ref[...], preferred_element_type=jnp.float32)
    h1 = jnp.maximum(h1 + b1_ref[...], 0.0)

    # Layer 2: feed bf16 back into the MXU (f32 accumulate).
    h2 = jnp.dot(h1.astype(jnp.bfloat16), w2_ref[...],
                 preferred_element_type=jnp.float32)
    h2 = jnp.maximum(h2 + b2_ref[...], 0.0)

    # Layer 3 (64 -> 1): VPU multiply + XLU lane reduction (kept in f32; v5e has
    # no bf16 VPU path) instead of an N=1 MXU matmul.
    return jnp.sum(h2 * w3_ref[...], axis=-1, keepdims=True) + b3_ref[0, 0]


def _mlp_kernel_lane_dense(x_ref, w1_ref, b1_ref, w2_ref, b2_ref, w3_ref,
                           b3_ref, o_ref, *, relayout):
    out_col = _mlp_body(x_ref, w1_ref, b1_ref, w2_ref, b2_ref, w3_ref, b3_ref)
    # Sublane -> lane relayout: store becomes ~tile_b/128 lane-dense vsts
    # instead of tile_b/8 masked (tile_b, 1) partial stores.
    o_ref[...] = relayout(out_col, o_ref.shape).astype(o_ref.dtype)


def _mlp_kernel_column(x_ref, w1_ref, b1_ref, w2_ref, b2_ref, w3_ref,
                       b3_ref, o_ref):
    out_col = _mlp_body(x_ref, w1_ref, b1_ref, w2_ref, b2_ref, w3_ref, b3_ref)
    o_ref[...] = out_col.astype(o_ref.dtype)


def _relayout_einshape(col, out_shape):
    del out_shape
    return pltpu.einshape("ab->ba", col)          # (tile_b, 1) -> (1, tile_b)


def _relayout_reshape(col, out_shape):
    return col.reshape(out_shape)                 # (tile_b, 1) -> (1, tile_b)


# ---------------------------------------------------------------------------
# Tile / VMEM budgeting (generation-aware)
# ---------------------------------------------------------------------------

def _vmem_budget_bytes():
    """Scoped-VMEM budget with headroom for Mosaic scratch + pipeline buffers."""
    cap = 128 * 1024 * 1024
    try:
        info = pltpu.get_tpu_info()
        cap = int(getattr(info, "vmem_capacity_bytes", cap) or cap)
    except Exception:
        pass
    # ~41 MiB on v7x (64 MiB physical per TC), ~83 MiB on v5e/v6e (128 MiB).
    return int(min(cap * 0.65, 96 * 1024 * 1024))


def _choose_tile_b(batch, features, vmem_budget):
    """Pick a batch tile: multi-MiB tiles, multiple of 512 for large batches."""
    if batch <= 1024:
        # Tiny batches: one small step; multiple of 16 for bf16 row packing.
        return _round_up(batch, 16)
    # Per-row resident VMEM: double-buffered f32 x row, activations
    # (h1 f32, h1 bf16, h2 f32, layer-3 product f32), double-buffered output.
    row_bytes = 2 * features * 4 + (128 * 4 + 128 * 2 + 64 * 4 + 64 * 4) + 2 * 4
    cap = (int(vmem_budget * 0.6) // row_bytes) // 512 * 512
    cap = max(512, min(32768, cap))
    # >= 2 grid steps (hides the pipeline prologue, lets the batch axis shard
    # across v7x's two TensorCores); keep the step count even when possible.
    n_steps = max(_cdiv(batch, cap), 2)
    if n_steps % 2:
        n_steps += 1
    return min(_round_up(_cdiv(batch, n_steps), 512), cap)


# ---------------------------------------------------------------------------
# pallas_call builder + wrapper
# ---------------------------------------------------------------------------

@functools.lru_cache(maxsize=None)
def _build_forward(features, tile_b, n_tiles, lane_dense, relayout, vmem_limit):
    x_spec = pl.BlockSpec((tile_b, features), lambda i: (i, 0))   # pipelined
    # Constant index maps: weights/biases stay resident in VMEM across steps.
    const_specs = [
        pl.BlockSpec((features, 128), lambda i: (0, 0)),          # w1 (bf16)
        pl.BlockSpec((1, 128), lambda i: (0, 0)),                 # b1 (f32)
        pl.BlockSpec((128, 64), lambda i: (0, 0)),                # w2 (bf16)
        pl.BlockSpec((1, 64), lambda i: (0, 0)),                  # b2 (f32)
        pl.BlockSpec((1, 64), lambda i: (0, 0)),                  # w3 row (f32)
        pl.BlockSpec(memory_space=pltpu.MemorySpace.SMEM),        # b3 scalar
    ]
    if lane_dense:
        out_shape = jax.ShapeDtypeStruct((n_tiles, 1, tile_b), jnp.float32)
        out_spec = pl.BlockSpec((None, 1, tile_b), lambda i: (i, 0, 0))
        kernel = functools.partial(_mlp_kernel_lane_dense, relayout=relayout)
    else:
        out_shape = jax.ShapeDtypeStruct((n_tiles * tile_b, 1), jnp.float32)
        out_spec = pl.BlockSpec((tile_b, 1), lambda i: (i, 0))
        kernel = _mlp_kernel_column

    rows = n_tiles * tile_b
    flops = 2 * rows * (features * 128 + 128 * 64 + 64)
    bytes_accessed = (rows * (features * 4 + 4)
                      + (features * 128 + 128 * 64) * 2
                      + (128 + 64 + 64 + 1) * 4)

    return pl.pallas_call(
        kernel,
        out_shape=out_shape,
        grid_spec=pltpu.PrefetchScalarGridSpec(
            num_scalar_prefetch=0,
            grid=(n_tiles,),
            in_specs=[x_spec] + const_specs,
            out_specs=out_spec,
        ),
        compiler_params=pltpu.CompilerParams(
            dimension_semantics=("parallel",),   # batch axis -> 2 TCs on v7x
            vmem_limit_bytes=vmem_limit,
        ),
        cost_estimate=pl.CostEstimate(
            flops=flops, transcendentals=0, bytes_accessed=bytes_accessed),
    )


# Output-layout variants, tried in order; the first that compiles+runs is cached.
_VARIANTS = (
    ("lane_dense_einshape", True, _relayout_einshape),
    ("lane_dense_reshape", True, _relayout_reshape),
    ("column", False, None),
)
_SELECTED_VARIANT = [None]


def co2_emission_model(x, params, *, tile_b=None):
    """Forward pass of CO2EmissionModel.

    x: (B, F) float32 (passed to the kernel as-is - no wrapper cast/pad pass)
    params: w1 (F,128), b1 (1,128), w2 (128,64), b2 (1,64), w3 (64,1), b3 (1,1)
    returns: (B, 1) float32

    Note: variant selection uses eager execution; if you wrap this in jit,
    select a variant with one eager call first (it is cached).
    """
    batch, features = x.shape
    vmem_limit = _vmem_budget_bytes()
    if tile_b is None:
        tile_b = _choose_tile_b(batch, features, vmem_limit)
    else:
        tile_b = _round_up(tile_b, 16)
    n_tiles = _cdiv(batch, tile_b)     # ragged last block is masked by Pallas

    # Weights are tiny: cast once in the wrapper.  x stays f32 (cast in-kernel).
    w1 = params["w1"].astype(jnp.bfloat16)
    w2 = params["w2"].astype(jnp.bfloat16)
    b1 = params["b1"].astype(jnp.float32).reshape(1, 128)
    b2 = params["b2"].astype(jnp.float32).reshape(1, 64)
    w3_row = params["w3"].astype(jnp.float32).reshape(1, 64)
    b3 = params["b3"].astype(jnp.float32).reshape(1, 1)
    args = (x, w1, b1, w2, b2, w3_row, b3)

    # TODO(synk): the sublane->lane relayout of the (tile_b, 1) result column has
    # no single guaranteed Pallas op; we try einshape, then reshape, then fall
    # back to the column-store kernel so the forward pass always runs.
    variants = []
    if _SELECTED_VARIANT[0] is not None:
        variants.append(_SELECTED_VARIANT[0])
    for v in _VARIANTS:
        if v not in variants:
            variants.append(v)

    last_err = None
    for name, lane_dense, relayout in variants:
        try:
            fwd = _build_forward(features, tile_b, n_tiles, lane_dense,
                                 relayout, vmem_limit)
            out = fwd(*args)
            out = jax.block_until_ready(out)   # surface lowering/runtime errors
            _SELECTED_VARIANT[0] = (name, lane_dense, relayout)
            if lane_dense:
                return out.reshape(n_tiles * tile_b, 1)[:batch]
            return out[:batch]
        except Exception as e:                 # fall back to the next variant
            last_err = e
    raise last_err


# ---------------------------------------------------------------------------
# Parameters + references
# ---------------------------------------------------------------------------

def init_params(key, input_size):
    """Deterministic synthetic parameters (shapes match the PyTorch module)."""
    k1, k2, k3, k4, k5, k6 = jax.random.split(key, 6)
    s1 = 1.0 / jnp.sqrt(input_size)
    s2 = 1.0 / jnp.sqrt(128.0)
    s3 = 1.0 / jnp.sqrt(64.0)
    return {
        "w1": jax.random.uniform(k1, (input_size, 128), jnp.float32, -s1, s1),
        "b1": jax.random.uniform(k2, (1, 128), jnp.float32, -s1, s1),
        "w2": jax.random.uniform(k3, (128, 64), jnp.float32, -s2, s2),
        "b2": jax.random.uniform(k4, (1, 64), jnp.float32, -s2, s2),
        "w3": jax.random.uniform(k5, (64, 1), jnp.float32, -s3, s3),
        "b3": jax.random.uniform(k6, (1, 1), jnp.float32, -s3, s3),
    }


def reference_forward_f32(x, p):
    h1 = jnp.maximum(x @ p["w1"] + p["b1"], 0.0)
    h2 = jnp.maximum(h1 @ p["w2"] + p["b2"], 0.0)
    return h2 @ p["w3"] + p["b3"]


def reference_forward_mixed(x, p):
    """Reference mirroring the kernel's bf16/f32 mixed precision."""
    h1 = jnp.dot(x.astype(jnp.bfloat16), p["w1"].astype(jnp.bfloat16),
                 preferred_element_type=jnp.float32) + p["b1"]
    h1 = jnp.maximum(h1, 0.0).astype(jnp.bfloat16)
    h2 = jnp.dot(h1, p["w2"].astype(jnp.bfloat16),
                 preferred_element_type=jnp.float32) + p["b2"]
    h2 = jnp.maximum(h2, 0.0)
    return jnp.sum(h2 * p["w3"].reshape(1, -1), axis=-1, keepdims=True) + p["b3"]


if __name__ == "__main__":
    key = jax.random.PRNGKey(0)
    kx, kp, kx2 = jax.random.split(key, 3)

    input_size = 32   # stand-in for X_train.shape[1]
    params = init_params(kp, input_size)

    # Small single-tile case.
    batch = 8
    x = jax.random.normal(kx, (batch, input_size), dtype=jnp.float32)
    out = jax.block_until_ready(co2_emission_model(x, params))
    assert out.shape == (batch, 1)

    ref_mixed = reference_forward_mixed(x, params)
    ref_f32 = reference_forward_f32(x, params)
    assert jnp.allclose(out, ref_mixed, atol=1e-3, rtol=1e-3), \
        float(jnp.max(jnp.abs(out - ref_mixed)))
    assert jnp.allclose(out, ref_f32, atol=3e-2, rtol=3e-2), \
        float(jnp.max(jnp.abs(out - ref_f32)))

    # Multi-tile case with a ragged last block (exercises grid + edge masking).
    batch2 = 300
    x2 = jax.random.normal(kx2, (batch2, input_size), dtype=jnp.float32)
    out2 = jax.block_until_ready(co2_emission_model(x2, params, tile_b=128))
    assert out2.shape == (batch2, 1)
    ref2 = reference_forward_mixed(x2, params)
    assert jnp.allclose(out2, ref2, atol=1e-3, rtol=1e-3), \
        float(jnp.max(jnp.abs(out2 - ref2)))

    print("KERNEL_OK")
</pallas_src>

<mosaic_0001>
module attributes {stable_mosaic.version = 11 : i64} {
  func.func @_mlp_kernel_lane_dense(%arg0: i32, %arg1: memref<16x32xf32, #tpu.memory_space<vmem>>, %arg2: memref<32x128xbf16, #tpu.memory_space<vmem>>, %arg3: memref<1x128xf32, #tpu.memory_space<vmem>>, %arg4: memref<128x64xbf16, #tpu.memory_space<vmem>>, %arg5: memref<1x64xf32, #tpu.memory_space<vmem>>, %arg6: memref<1x64xf32, #tpu.memory_space<vmem>>, %arg7: memref<1x1xf32, #tpu.memory_space<smem>>, %arg8: memref<1x1x16xf32, #tpu.memory_space<vmem>>) attributes {dimension_semantics = [#tpu.dimension_semantics<parallel>], iteration_bounds = array<i64: 1>, scalar_prefetch = 0 : i64, scratch_operands = 0 : i64, tpu.core_type = #tpu.core_type<tc>, window_params = [{transform_indices = @transform_0, window_bounds = array<i64: 16, 32>}, {pipeline_mode = #tpu.pipeline_mode<synchronous>, transform_indices = @transform_1, window_bounds = array<i64: 32, 128>}, {pipeline_mode = #tpu.pipeline_mode<synchronous>, transform_indices = @transform_2, window_bounds = array<i64: 1, 128>}, {pipeline_mode = #tpu.pipeline_mode<synchronous>, transform_indices = @transform_3, window_bounds = array<i64: 128, 64>}, {pipeline_mode = #tpu.pipeline_mode<synchronous>, transform_indices = @transform_4, window_bounds = array<i64: 1, 64>}, {pipeline_mode = #tpu.pipeline_mode<synchronous>, transform_indices = @transform_5, window_bounds = array<i64: 1, 64>}, {transform_indices = @transform_6, window_bounds = array<i64: 1, 1>}, {transform_indices = @transform_7, window_bounds = array<i64: 1, 1, 16>}]} {
    %c0 = arith.constant 0 : index
    %c0_0 = arith.constant 0 : index
    %0 = vector.load %arg1[%c0, %c0_0] : memref<16x32xf32, #tpu.memory_space<vmem>>, vector<16x32xf32>
    %1 = arith.truncf %0 : vector<16x32xf32> to vector<16x32xbf16>
    %c0_1 = arith.constant 0 : index
    %c0_2 = arith.constant 0 : index
    %2 = vector.load %arg2[%c0_1, %c0_2] : memref<32x128xbf16, #tpu.memory_space<vmem>>, vector<32x128xbf16>
    %cst = arith.constant dense<0.000000e+00> : vector<16x128xf32>
    %3 = tpu.matmul %1, %2, %cst {dimension_numbers = #tpu.dot_dimension_numbers<[1], [0], [0], [1], [0, 0, 1, 1], [], []>} : vector<16x32xbf16>, vector<32x128xbf16>, vector<16x128xf32> -> vector<16x128xf32>
    %c0_3 = arith.constant 0 : index
    %c0_4 = arith.constant 0 : index
    %4 = vector.load %arg3[%c0_3, %c0_4] : memref<1x128xf32, #tpu.memory_space<vmem>>, vector<1x128xf32>
    %5 = vector.broadcast %4 : vector<1x128xf32> to vector<16x128xf32>
    %6 = arith.addf %3, %5 : vector<16x128xf32>
    %cst_5 = arith.constant 0.000000e+00 : f32
    %7 = vector.broadcast %cst_5 : f32 to vector<16x128xf32>
    %8 = arith.maximumf %6, %7 : vector<16x128xf32>
    %9 = arith.truncf %8 : vector<16x128xf32> to vector<16x128xbf16>
    %c0_6 = arith.constant 0 : index
    %c0_7 = arith.constant 0 : index
    %10 = vector.load %arg4[%c0_6, %c0_7] : memref<128x64xbf16, #tpu.memory_space<vmem>>, vector<128x64xbf16>
    %cst_8 = arith.constant dense<0.000000e+00> : vector<16x64xf32>
    %11 = tpu.matmul %9, %10, %cst_8 {dimension_numbers = #tpu.dot_dimension_numbers<[1], [0], [0], [1], [0, 0, 1, 1], [], []>} : vector<16x128xbf16>, vector<128x64xbf16>, vector<16x64xf32> -> vector<16x64xf32>
    %c0_9 = arith.constant 0 : index
    %c0_10 = arith.constant 0 : index
    %12 = vector.load %arg5[%c0_9, %c0_10] : memref<1x64xf32, #tpu.memory_space<vmem>>, vector<1x64xf32>
    %13 = vector.broadcast %12 : vector<1x64xf32> to vector<16x64xf32>
    %14 = arith.addf %11, %13 : vector<16x64xf32>
    %cst_11 = arith.constant 0.000000e+00 : f32
    %15 = vector.broadcast %cst_11 : f32 to vector<16x64xf32>
    %16 = arith.maximumf %14, %15 : vector<16x64xf32>
    %c0_12 = arith.constant 0 : index
    %c0_13 = arith.constant 0 : index
    %17 = vector.load %arg6[%c0_12, %c0_13] : memref<1x64xf32, #tpu.memory_space<vmem>>, vector<1x64xf32>
    %18 = vector.broadcast %17 : vector<1x64xf32> to vector<16x64xf32>
    %19 = arith.mulf %16, %18 : vector<16x64xf32>
    %cst_14 = arith.constant dense<0.000000e+00> : vector<16xf32>
    %20 = vector.multi_reduction <add>, %19, %cst_14 [1] : vector<16x64xf32> to vector<16xf32>
    %21 = vector.shape_cast %20 : vector<16xf32> to vector<16x1xf32>
    %c0_15 = arith.constant 0 : index
    %c0_16 = arith.constant 0 : index
    %22 = memref.load %arg7[%c0_15, %c0_16] : memref<1x1xf32, #tpu.memory_space<smem>>
    %23 = vector.broadcast %22 : f32 to vector<16x1xf32>
    %24 = arith.addf %21, %23 : vector<16x1xf32>
    %25 = tpu.transpose %24, [1, 0] : vector<16x1xf32> -> vector<1x16xf32>
    %c0_17 = arith.constant 0 : index
    %c0_18 = arith.constant 0 : index
    %c0_19 = arith.constant 0 : index
    %26 = vector.load %arg8[%c0_17, %c0_18, %c0_19] : memref<1x1x16xf32, #tpu.memory_space<vmem>>, vector<1x1x16xf32>
    %27 = vector.shape_cast %26 : vector<1x1x16xf32> to vector<1x16xf32>
    %28 = vector.shape_cast %25 : vector<1x16xf32> to vector<1x1x16xf32>
    tpu.vector_store %arg8[%c0_17, %c0_18, %c0_19], %28 {strides = array<i32>} : memref<1x1x16xf32, #tpu.memory_space<vmem>>, vector<1x1x16xf32>,
    return
  }
  func.func @transform_0(%arg0: i32) -> (i32, i32) {
    %c0_i32 = arith.constant 0 : i32
    %c0_i32_0 = arith.constant 0 : i32
    return %arg0, %c0_i32 : i32, i32
  }
  func.func @transform_1(%arg0: i32) -> (i32, i32) {
    %c0_i32 = arith.constant 0 : i32
    %c0_i32_0 = arith.constant 0 : i32
    %c0_i32_1 = arith.constant 0 : i32
    return %c0_i32, %c0_i32_0 : i32, i32
  }
  func.func @transform_2(%arg0: i32) -> (i32, i32) {
    %c0_i32 = arith.constant 0 : i32
    %c0_i32_0 = arith.constant 0 : i32
    %c0_i32_1 = arith.constant 0 : i32
    return %c0_i32, %c0_i32_0 : i32, i32
  }
  func.func @transform_3(%arg0: i32) -> (i32, i32) {
    %c0_i32 = arith.constant 0 : i32
    %c0_i32_0 = arith.constant 0 : i32
    %c0_i32_1 = arith.constant 0 : i32
    return %c0_i32, %c0_i32_0 : i32, i32
  }
  func.func @transform_4(%arg0: i32) -> (i32, i32) {
    %c0_i32 = arith.constant 0 : i32
    %c0_i32_0 = arith.constant 0 : i32
    %c0_i32_1 = arith.constant 0 : i32
    return %c0_i32, %c0_i32_0 : i32, i32
  }
  func.func @transform_5(%arg0: i32) -> (i32, i32) {
    %c0_i32 = arith.constant 0 : i32
    %c0_i32_0 = arith.constant 0 : i32
    %c0_i32_1 = arith.constant 0 : i32
    return %c0_i32, %c0_i32_0 : i32, i32
  }
  func.func @transform_6(%arg0: i32) -> (i32, i32) {
    %c0_i32 = arith.constant 0 : i32
    %c0_i32_0 = arith.constant 0 : i32
    %c0_i32_1 = arith.constant 0 : i32
    return %c0_i32, %c0_i32_0 : i32, i32
  }
  func.func @transform_7(%arg0: i32) -> (i32, i32, i32) {
    %c0_i32 = arith.constant 0 : i32
    %c0_i32_0 = arith.constant 0 : i32
    %c0_i32_1 = arith.constant 0 : i32
    return %arg0, %c0_i32, %c0_i32_0 : i32, i32, i32
  }
}

module attributes {stable_mosaic.version = 11 : i64} {
  func.func @_mlp_kernel_lane_dense(%arg0: i32, %arg1: memref<16x32xf32, #tpu.memory_space<vmem>>, %arg2: memref<32x128xbf16, #tpu.memory_space<vmem>>, %arg3: memref<1x128xf32, #tpu.memory_space<vmem>>, %arg4: memref<128x64xbf16, #tpu.memory_space<vmem>>, %arg5: memref<1x64xf32, #tpu.memory_space<vmem>>, %arg6: memref<1x64xf32, #tpu.memory_space<vmem>>, %arg7: memref<1x1xf32, #tpu.memory_space<smem>>, %arg8: memref<1x1x16xf32, #tpu.memory_space<vmem>>) attributes {dimension_semantics = [#tpu.dimension_semantics<parallel>], iteration_bounds = array<i64: 1>, scalar_prefetch = 0 : i64, scratch_operands = 0 : i64, tpu.core_type = #tpu.core_type<tc>, window_params = [{transform_indices = @transform_0, window_bounds = array<i64: 16, 32>}, {pipeline_mode = #tpu.pipeline_mode<synchronous>, transform_indices = @transform_1, window_bounds = array<i64: 32, 128>}, {pipeline_mode = #tpu.pipeline_mode<synchronous>, transform_indices = @transform_2, window_bounds = array<i64: 1, 128>}, {pipeline_mode = #tpu.pipeline_mode<synchronous>, transform_indices = @transform_3, window_bounds = array<i64: 128, 64>}, {pipeline_mode = #tpu.pipeline_mode<synchronous>, transform_indices = @transform_4, window_bounds = array<i64: 1, 64>}, {pipeline_mode = #tpu.pipeline_mode<synchronous>, transform_indices = @transform_5, window_bounds = array<i64: 1, 64>}, {transform_indices = @transform_6, window_bounds = array<i64: 1, 1>}, {transform_indices = @transform_7, window_bounds = array<i64: 1, 1, 16>}]} {
    %c0 = arith.constant 0 : index
    %c0_0 = arith.constant 0 : index
    %0 = vector.load %arg1[%c0, %c0_0] : memref<16x32xf32, #tpu.memory_space<vmem>>, vector<16x32xf32>
    %1 = arith.truncf %0 : vector<16x32xf32> to vector<16x32xbf16>
    %c0_1 = arith.constant 0 : index
    %c0_2 = arith.constant 0 : index
    %2 = vector.load %arg2[%c0_1, %c0_2] : memref<32x128xbf16, #tpu.memory_space<vmem>>, vector<32x128xbf16>
    %cst = arith.constant dense<0.000000e+00> : vector<16x128xf32>
    %3 = tpu.matmul %1, %2, %cst {dimension_numbers = #tpu.dot_dimension_numbers<[1], [0], [0], [1], [0, 0, 1, 1], [], []>} : vector<16x32xbf16>, vector<32x128xbf16>, vector<16x128xf32> -> vector<16x128xf32>
    %c0_3 = arith.constant 0 : index
    %c0_4 = arith.constant 0 : index
    %4 = vector.load %arg3[%c0_3, %c0_4] : memref<1x128xf32, #tpu.memory_space<vmem>>, vector<1x128xf32>
    %5 = vector.broadcast %4 : vector<1x128xf32> to vector<16x128xf32>
    %6 = arith.addf %3, %5 : vector<16x128xf32>
    %cst_5 = arith.constant 0.000000e+00 : f32
    %7 = vector.broadcast %cst_5 : f32 to vector<16x128xf32>
    %8 = arith.maximumf %6, %7 : vector<16x128xf32>
    %9 = arith.truncf %8 : vector<16x128xf32> to vector<16x128xbf16>
    %c0_6 = arith.constant 0 : index
    %c0_7 = arith.constant 0 : index
    %10 = vector.load %arg4[%c0_6, %c0_7] : memref<128x64xbf16, #tpu.memory_space<vmem>>, vector<128x64xbf16>
    %cst_8 = arith.constant dense<0.000000e+00> : vector<16x64xf32>
    %11 = tpu.matmul %9, %10, %cst_8 {dimension_numbers = #tpu.dot_dimension_numbers<[1], [0], [0], [1], [0, 0, 1, 1], [], []>} : vector<16x128xbf16>, vector<128x64xbf16>, vector<16x64xf32> -> vector<16x64xf32>
    %c0_9 = arith.constant 0 : index
    %c0_10 = arith.constant 0 : index
    %12 = vector.load %arg5[%c0_9, %c0_10] : memref<1x64xf32, #tpu.memory_space<vmem>>, vector<1x64xf32>
    %13 = vector.broadcast %12 : vector<1x64xf32> to vector<16x64xf32>
    %14 = arith.addf %11, %13 : vector<16x64xf32>
    %cst_11 = arith.constant 0.000000e+00 : f32
    %15 = vector.broadcast %cst_11 : f32 to vector<16x64xf32>
    %16 = arith.maximumf %14, %15 : vector<16x64xf32>
    %c0_12 = arith.constant 0 : index
    %c0_13 = arith.constant 0 : index
    %17 = vector.load %arg6[%c0_12, %c0_13] : memref<1x64xf32, #tpu.memory_space<vmem>>, vector<1x64xf32>
    %18 = vector.broadcast %17 : vector<1x64xf32> to vector<16x64xf32>
    %19 = arith.mulf %16, %18 : vector<16x64xf32>
    %cst_14 = arith.constant dense<0.000000e+00> : vector<16xf32>
    %20 = vector.multi_reduction <add>, %19, %cst_14 [1] : vector<16x64xf32> to vector<16xf32>
    %21 = vector.shape_cast %20 : vector<16xf32> to vector<16x1xf32>
    %c0_15 = arith.constant 0 : index
    %c0_16 = arith.constant 0 : index
    %22 = memref.load %arg7[%c0_15, %c0_16] : memref<1x1xf32, #tpu.memory_space<smem>>
    %23 = vector.broadcast %22 : f32 to vector<16x1xf32>
    %24 = arith.addf %21, %23 : vector<16x1xf32>
    %25 = vector.shape_cast %24 : vector<16x1xf32> to vector<1x16xf32>
    %c0_17 = arith.constant 0 : index
    %c0_18 = arith.constant 0 : index
    %c0_19 = arith.constant 0 : index
    %26 = vector.load %arg8[%c0_17, %c0_18, %c0_19] : memref<1x1x16xf32, #tpu.memory_space<vmem>>, vector<1x1x16xf32>
    %27 = vector.shape_cast %26 : vector<1x1x16xf32> to vector<1x16xf32>
    %28 = vector.shape_cast %25 : vector<1x16xf32> to vector<1x1x16xf32>
    tpu.vector_store %arg8[%c0_17, %c0_18, %c0_19], %28 {strides = array<i32>} : memref<1x1x16xf32, #tpu.memory_space<vmem>>, vector<1x1x16xf32>,
    return
  }
  func.func @transform_0(%arg0: i32) -> (i32, i32) {
    %c0_i32 = arith.constant 0 : i32
    %c0_i32_0 = arith.constant 0 : i32
    return %arg0, %c0_i32 : i32, i32
  }
  func.func @transform_1(%arg0: i32) -> (i32, i32) {
    %c0_i32 = arith.constant 0 : i32
    %c0_i32_0 = arith.constant 0 : i32
    %c0_i32_1 = arith.constant 0 : i32
    return %c0_i32, %c0_i32_0 : i32, i32
  }
  func.func @transform_2(%arg0: i32) -> (i32, i32) {
    %c0_i32 = arith.constant 0 : i32
    %c0_i32_0 = arith.constant 0 : i32
    %c0_i32_1 = arith.constant 0 : i32
    return %c0_i32, %c0_i32_0 : i32, i32
  }
  func.func @transform_3(%arg0: i32) -> (i32, i32) {
    %c0_i32 = arith.constant 0 : i32
    %c0_i32_0 = arith.constant 0 : i32
    %c0_i32_1 = arith.constant 0 : i32
    return %c0_i32, %c0_i32_0 : i32, i32
  }
  func.func @transform_4(%arg0: i32) -> (i32, i32) {
    %c0_i32 = arith.constant 0 : i32
    %c0_i32_0 = arith.constant 0 : i32
    %c0_i32_1 = arith.constant 0 : i32
    return %c0_i32, %c0_i32_0 : i32, i32
  }
  func.func @transform_5(%arg0: i32) -> (i32, i32) {
    %c0_i32 = arith.constant 0 : i32
    %c0_i32_0 = arith.constant 0 : i32
    %c0_i32_1 = arith.constant 0 : i32
    return %c0_i32, %c0_i32_0 : i32, i32
  }
  func.func @transform_6(%arg0: i32) -> (i32, i32) {
    %c0_i32 = arith.constant 0 : i32
    %c0_i32_0 = arith.constant 0 : i32
    %c0_i32_1 = arith.constant 0 : i32
    return %c0_i32, %c0_i32_0 : i32, i32
  }
  func.func @transform_7(%arg0: i32) -> (i32, i32, i32) {
    %c0_i32 = arith.constant 0 : i32
    %c0_i32_0 = arith.constant 0 : i32
    %c0_i32_1 = arith.constant 0 : i32
    return %arg0, %c0_i32, %c0_i32_0 : i32, i32, i32
  }
}

module attributes {stable_mosaic.version = 11 : i64} {
  func.func @_mlp_kernel_column(%arg0: i32, %arg1: memref<16x32xf32, #tpu.memory_space<vmem>>, %arg2: memref<32x128xbf16, #tpu.memory_space<vmem>>, %arg3: memref<1x128xf32, #tpu.memory_space<vmem>>, %arg4: memref<128x64xbf16, #tpu.memory_space<vmem>>, %arg5: memref<1x64xf32, #tpu.memory_space<vmem>>, %arg6: memref<1x64xf32, #tpu.memory_space<vmem>>, %arg7: memref<1x1xf32, #tpu.memory_space<smem>>, %arg8: memref<16x1xf32, #tpu.memory_space<vmem>>) attributes {dimension_semantics = [#tpu.dimension_semantics<parallel>], iteration_bounds = array<i64: 1>, scalar_prefetch = 0 : i64, scratch_operands = 0 : i64, tpu.core_type = #tpu.core_type<tc>, window_params = [{transform_indices = @transform_0, window_bounds = array<i64: 16, 32>}, {pipeline_mode = #tpu.pipeline_mode<synchronous>, transform_indices = @transform_1, window_bounds = array<i64: 32, 128>}, {pipeline_mode = #tpu.pipeline_mode<synchronous>, transform_indices = @transform_2, window_bounds = array<i64: 1, 128>}, {pipeline_mode = #tpu.pipeline_mode<synchronous>, transform_indices = @transform_3, window_bounds = array<i64: 128, 64>}, {pipeline_mode = #tpu.pipeline_mode<synchronous>, transform_indices = @transform_4, window_bounds = array<i64: 1, 64>}, {pipeline_mode = #tpu.pipeline_mode<synchronous>, transform_indices = @transform_5, window_bounds = array<i64: 1, 64>}, {transform_indices = @transform_6, window_bounds = array<i64: 1, 1>}, {transform_indices = @transform_7, window_bounds = array<i64: 16, 1>}]} {
    %c0 = arith.constant 0 : index
    %c0_0 = arith.constant 0 : index
    %0 = vector.load %arg1[%c0, %c0_0] : memref<16x32xf32, #tpu.memory_space<vmem>>, vector<16x32xf32>
    %1 = arith.truncf %0 : vector<16x32xf32> to vector<16x32xbf16>
    %c0_1 = arith.constant 0 : index
    %c0_2 = arith.constant 0 : index
    %2 = vector.load %arg2[%c0_1, %c0_2] : memref<32x128xbf16, #tpu.memory_space<vmem>>, vector<32x128xbf16>
    %cst = arith.constant dense<0.000000e+00> : vector<16x128xf32>
    %3 = tpu.matmul %1, %2, %cst {dimension_numbers = #tpu.dot_dimension_numbers<[1], [0], [0], [1], [0, 0, 1, 1], [], []>} : vector<16x32xbf16>, vector<32x128xbf16>, vector<16x128xf32> -> vector<16x128xf32>
    %c0_3 = arith.constant 0 : index
    %c0_4 = arith.constant 0 : index
    %4 = vector.load %arg3[%c0_3, %c0_4] : memref<1x128xf32, #tpu.memory_space<vmem>>, vector<1x128xf32>
    %5 = vector.broadcast %4 : vector<1x128xf32> to vector<16x128xf32>
    %6 = arith.addf %3, %5 : vector<16x128xf32>
    %cst_5 = arith.constant 0.000000e+00 : f32
    %7 = vector.broadcast %cst_5 : f32 to vector<16x128xf32>
    %8 = arith.maximumf %6, %7 : vector<16x128xf32>
    %9 = arith.truncf %8 : vector<16x128xf32> to vector<16x128xbf16>
    %c0_6 = arith.constant 0 : index
    %c0_7 = arith.constant 0 : index
    %10 = vector.load %arg4[%c0_6, %c0_7] : memref<128x64xbf16, #tpu.memory_space<vmem>>, vector<128x64xbf16>
    %cst_8 = arith.constant dense<0.000000e+00> : vector<16x64xf32>
    %11 = tpu.matmul %9, %10, %cst_8 {dimension_numbers = #tpu.dot_dimension_numbers<[1], [0], [0], [1], [0, 0, 1, 1], [], []>} : vector<16x128xbf16>, vector<128x64xbf16>, vector<16x64xf32> -> vector<16x64xf32>
    %c0_9 = arith.constant 0 : index
    %c0_10 = arith.constant 0 : index
    %12 = vector.load %arg5[%c0_9, %c0_10] : memref<1x64xf32, #tpu.memory_space<vmem>>, vector<1x64xf32>
    %13 = vector.broadcast %12 : vector<1x64xf32> to vector<16x64xf32>
    %14 = arith.addf %11, %13 : vector<16x64xf32>
    %cst_11 = arith.constant 0.000000e+00 : f32
    %15 = vector.broadcast %cst_11 : f32 to vector<16x64xf32>
    %16 = arith.maximumf %14, %15 : vector<16x64xf32>
    %c0_12 = arith.constant 0 : index
    %c0_13 = arith.constant 0 : index
    %17 = vector.load %arg6[%c0_12, %c0_13] : memref<1x64xf32, #tpu.memory_space<vmem>>, vector<1x64xf32>
    %18 = vector.broadcast %17 : vector<1x64xf32> to vector<16x64xf32>
    %19 = arith.mulf %16, %18 : vector<16x64xf32>
    %cst_14 = arith.constant dense<0.000000e+00> : vector<16xf32>
    %20 = vector.multi_reduction <add>, %19, %cst_14 [1] : vector<16x64xf32> to vector<16xf32>
    %21 = vector.shape_cast %20 : vector<16xf32> to vector<16x1xf32>
    %c0_15 = arith.constant 0 : index
    %c0_16 = arith.constant 0 : index
    %22 = memref.load %arg7[%c0_15, %c0_16] : memref<1x1xf32, #tpu.memory_space<smem>>
    %23 = vector.broadcast %22 : f32 to vector<16x1xf32>
    %24 = arith.addf %21, %23 : vector<16x1xf32>
    %c0_17 = arith.constant 0 : index
    %c0_18 = arith.constant 0 : index
    %25 = vector.load %arg8[%c0_17, %c0_18] : memref<16x1xf32, #tpu.memory_space<vmem>>, vector<16x1xf32>
    tpu.vector_store %arg8[%c0_17, %c0_18], %24 {strides = array<i32>} : memref<16x1xf32, #tpu.memory_space<vmem>>, vector<16x1xf32>,
    return
  }
  func.func @transform_0(%arg0: i32) -> (i32, i32) {
    %c0_i32 = arith.constant 0 : i32
    %c0_i32_0 = arith.constant 0 : i32
    return %arg0, %c0_i32 : i32, i32
  }
  func.func @transform_1(%arg0: i32) -> (i32, i32) {
    %c0_i32 = arith.constant 0 : i32
    %c0_i32_0 = arith.constant 0 : i32
    %c0_i32_1 = arith.constant 0 : i32
    return %c0_i32, %c0_i32_0 : i32, i32
  }
  func.func @transform_2(%arg0: i32) -> (i32, i32) {
    %c0_i32 = arith.constant 0 : i32
    %c0_i32_0 = arith.constant 0 : i32
    %c0_i32_1 = arith.constant 0 : i32
    return %c0_i32, %c0_i32_0 : i32, i32
  }
  func.func @transform_3(%arg0: i32) -> (i32, i32) {
    %c0_i32 = arith.constant 0 : i32
    %c0_i32_0 = arith.constant 0 : i32
    %c0_i32_1 = arith.constant 0 : i32
    return %c0_i32, %c0_i32_0 : i32, i32
  }
  func.func @transform_4(%arg0: i32) -> (i32, i32) {
    %c0_i32 = arith.constant 0 : i32
    %c0_i32_0 = arith.constant 0 : i32
    %c0_i32_1 = arith.constant 0 : i32
    return %c0_i32, %c0_i32_0 : i32, i32
  }
  func.func @transform_5(%arg0: i32) -> (i32, i32) {
    %c0_i32 = arith.constant 0 : i32
    %c0_i32_0 = arith.constant 0 : i32
    %c0_i32_1 = arith.constant 0 : i32
    return %c0_i32, %c0_i32_0 : i32, i32
  }
  func.func @transform_6(%arg0: i32) -> (i32, i32) {
    %c0_i32 = arith.constant 0 : i32
    %c0_i32_0 = arith.constant 0 : i32
    %c0_i32_1 = arith.constant 0 : i32
    return %c0_i32, %c0_i32_0 : i32, i32
  }
  func.func @transform_7(%arg0: i32) -> (i32, i32) {
    %c0_i32 = arith.constant 0 : i32
    %c0_i32_0 = arith.constant 0 : i32
    return %arg0, %c0_i32 : i32, i32
  }
}

</mosaic_0001>

<llo_original>
// kernel: tpu_custom_call.1
$region0: #{tpu_custom_call.1}
  #allocation0 [shape = 'u32[]', space=smem, size = 0x4, offset = 0x4, fixed_abs, tag = 'smem constant byte address 0x4 - core index']
  #allocation1 [shape = 'u32[144,128]{1,0:T(1,128)}', space=vmem, size = 0x12000, scoped, tag = 'internal scratch']
  #allocation2 [shape = 'f32[1,1]{1,0:T(1,128)S(6)}', space=smem, size = 0x200, scoped, tag = 'scoped memory for tpu_custom_call.1']
  %s0 = inlined_call_operand.hbm [shape: f32[8,32], index: 0, kind: input, shape index: {}]
  %s1 = inlined_call_operand.hbm [shape: bf16[32,128], index: 1, kind: input, shape index: {}]
  %s2 = inlined_call_operand.hbm [shape: f32[1,128], index: 2, kind: input, shape index: {}]
  %s3 = inlined_call_operand.hbm [shape: bf16[128,64], index: 3, kind: input, shape index: {}]
  %s4 = inlined_call_operand.hbm [shape: f32[1,64], index: 4, kind: input, shape index: {}]
  %s5 = inlined_call_operand.hbm [shape: f32[1,64], index: 5, kind: input, shape index: {}]
  %s6 = inlined_call_operand.<no memory space> [shape: f32[1,1], index: 6, kind: input, shape index: {}]
  %s7 = inlined_call_operand.hbm [shape: f32[1,1,16], index: 7, kind: output, shape index: {}]
  %s8 = sld [smem:[#allocation0]]
  $region62: #{tpu_custom_call.1} parent=0
    _
  %s10 = ssub.s32 1, %s8
  %s11 = scalar_select 0, %s10, %s8
  %12 = sst [smem:[#allocation2]] %s6
  $region1: #{tpu_custom_call.1} parent=0
    #allocation3 [shape = 'u8[8192]{0}', space=vmem, size = 0x2000, scoped, tag = 'input window, operand 0, single buffered']
    #allocation4 [shape = 's32[1]{0}', space=sflag, size = 0x4, scoped, tag = 'scoped memory for tpu_custom_call.1']
    #allocation5 [shape = 's32[1]{0}', space=sflag, size = 0x4, scoped, tag = 'scoped memory for tpu_custom_call.1']
    #allocation6 [shape = 'u8[8192]{0}', space=vmem, size = 0x2000, scoped, tag = 'input window, operand 1, single buffered']
    #allocation7 [shape = 's32[1]{0}', space=sflag, size = 0x4, scoped, tag = 'scoped memory for tpu_custom_call.1']
    #allocation8 [shape = 'u8[512]{0}', space=vmem, size = 0x400, scoped, tag = 'input window, operand 2, single buffered']
    #allocation9 [shape = 'u8[32768]{0}', space=vmem, size = 0x8000, scoped, tag = 'input window, operand 3, single buffered']
    #allocation10 [shape = 's32[1]{0}', space=sflag, size = 0x4, scoped, tag = 'scoped memory for tpu_custom_call.1']
    #allocation11 [shape = 'u8[512]{0}', space=vmem, size = 0x400, scoped, tag = 'input window, operand 4, single buffered']
    #allocation12 [shape = 'u8[512]{0}', space=vmem, size = 0x400, scoped, tag = 'input window, operand 5, single buffered']
    #allocation13 [shape = 's32[1]{0}', space=sflag, size = 0x4, scoped, tag = 'scoped memory for tpu_custom_call.1']
    #allocation14 [shape = 'u8[512]{0}', space=vmem, size = 0x400, scoped, tag = 'output window, operand 0, single buffered']
    %13 = vsyncpa [#allocation4], 0
    %14 = vsyncpa [#allocation7], 0
    %15 = vsyncpa [#allocation10], 0
    %16 = vsyncpa [#allocation13], 0
    %17 = vsyncpa [#allocation5], 0
    // Predicated region
    $region2: #{tpu_custom_call.1} parent=1 // pred_check
      _
    $region3: #{tpu_custom_call.1} parent=1 // pred_check_branch
      %19 = sbr.rel (0) target = $region5
    $region4: #{tpu_custom_call.1} parent=1 // pred_region
      %s21 = ssub.s32 256, 128
      %22 = vsyncadd [#allocation4], %s21
      %s23 = sshll.u32 [#allocation3], 4
      %s24 = int_to_ptr.vmem [resolvable:$true] %s23
      %29 = dma.hbm_to_vmem [thread:$0]  %s0, 128, %s24, [#allocation4], 128, 128, 8
    $region5: #{tpu_custom_call.1} parent=1 // pred_fallthru
      _
    // Predicated region
    $region6: #{tpu_custom_call.1} parent=1 // pred_check
      _
    $region7: #{tpu_custom_call.1} parent=1 // pred_check_branch
      %31 = sbr.rel (0) target = $region9
    $region8: #{tpu_custom_call.1} parent=1 // pred_region
      %s33 = ssub.s32 256, 256
      %34 = vsyncadd [#allocation7], %s33
      %s35 = sshll.u32 [#allocation6], 4
      %s36 = int_to_ptr.vmem [resolvable:$true] %s35
      %41 = dma.hbm_to_vmem [thread:$0]  %s1, 256, %s36, [#allocation7], 64, 64, 4
    $region9: #{tpu_custom_call.1} parent=1 // pred_fallthru
      _
    // Predicated region
    $region10: #{tpu_custom_call.1} parent=1 // pred_check
      _
    $region11: #{tpu_custom_call.1} parent=1 // pred_check_branch
      %43 = sbr.rel (0) target = $region13
    $region12: #{tpu_custom_call.1} parent=1 // pred_region
      %s45 = ssub.s32 16, 16
      %46 = vsyncadd [#allocation7], %s45
      %s48 = sshll.u32 [#allocation8], 4
      %s49 = int_to_ptr.vmem [resolvable:$true] %s48
      %51 = dma.hbm_to_vmem [thread:$0]  %s2, 16, %s49, [#allocation7]
    $region13: #{tpu_custom_call.1} parent=1 // pred_fallthru
      _
    // Predicated region
    $region14: #{tpu_custom_call.1} parent=1 // pred_check
      _
    $region15: #{tpu_custom_call.1} parent=1 // pred_check_branch
      %53 = sbr.rel (0) target = $region17
    $region16: #{tpu_custom_call.1} parent=1 // pred_region
      %s55 = ssub.s32 1024, 1024
      %56 = vsyncadd [#allocation10], %s55
      %s57 = sshll.u32 [#allocation9], 4
      %s58 = int_to_ptr.vmem [resolvable:$true] %s57
      %63 = dma.hbm_to_vmem [thread:$0]  %s3, 1024, %s58, [#allocation10], 64, 64, 4
    $region17: #{tpu_custom_call.1} parent=1 // pred_fallthru
      _
    // Predicated region
    $region18: #{tpu_custom_call.1} parent=1 // pred_check
      _
    $region19: #{tpu_custom_call.1} parent=1 // pred_check_branch
      %65 = sbr.rel (0) target = $region21
    $region20: #{tpu_custom_call.1} parent=1 // pred_region
      %s67 = ssub.s32 16, 16
      %68 = vsyncadd [#allocation10], %s67
      %s70 = sshll.u32 [#allocation11], 4
      %s71 = int_to_ptr.vmem [resolvable:$true] %s70
      %73 = dma.hbm_to_vmem [thread:$0]  %s4, 16, %s71, [#allocation10]
    $region21: #{tpu_custom_call.1} parent=1 // pred_fallthru
      _
    // Predicated region
    $region22: #{tpu_custom_call.1} parent=1 // pred_check
      _
    $region23: #{tpu_custom_call.1} parent=1 // pred_check_branch
      %75 = sbr.rel (0) target = $region25
    $region24: #{tpu_custom_call.1} parent=1 // pred_region
      %s77 = ssub.s32 16, 16
      %78 = vsyncadd [#allocation13], %s77
      %s80 = sshll.u32 [#allocation12], 4
      %s81 = int_to_ptr.vmem [resolvable:$true] %s80
      %83 = dma.hbm_to_vmem [thread:$0]  %s5, 16, %s81, [#allocation13]
    $region25: #{tpu_custom_call.1} parent=1 // pred_fallthru
      _
    // Predicated region
    $region26: #{tpu_custom_call.1} parent=1 // pred_check
      _
    $region27: #{tpu_custom_call.1} parent=1 // pred_check_branch
      %85 = sbr.rel (0) target = $region29
    $region28: #{tpu_custom_call.1} parent=1 // pred_region
      _
    $region29: #{tpu_custom_call.1} parent=1 // pred_fallthru
      _
    // Predicated region
    $region30: #{tpu_custom_call.1} parent=1 // pred_check
      _
    $region31: #{tpu_custom_call.1} parent=1 // pred_check_branch
      %87 = sbr.rel (0) target = $region33
    $region32: #{tpu_custom_call.1} parent=1 // pred_region
      %88 = dma.done [#allocation4], 256
    $region33: #{tpu_custom_call.1} parent=1 // pred_fallthru
      _
    // Predicated region
    $region34: #{tpu_custom_call.1} parent=1 // pred_check
      _
    $region35: #{tpu_custom_call.1} parent=1 // pred_check_branch
      %90 = sbr.rel (0) target = $region37
    $region36: #{tpu_custom_call.1} parent=1 // pred_region
      %91 = dma.done [#allocation7], 256
    $region37: #{tpu_custom_call.1} parent=1 // pred_fallthru
      _
    // Predicated region
    $region38: #{tpu_custom_call.1} parent=1 // pred_check
      _
    $region39: #{tpu_custom_call.1} parent=1 // pred_check_branch
      %93 = sbr.rel (0) target = $region41
    $region40: #{tpu_custom_call.1} parent=1 // pred_region
      %94 = dma.done [#allocation7], 16
    $region41: #{tpu_custom_call.1} parent=1 // pred_fallthru
      _
    // Predicated region
    $region42: #{tpu_custom_call.1} parent=1 // pred_check
      _
    $region43: #{tpu_custom_call.1} parent=1 // pred_check_branch
      %96 = sbr.rel (0) target = $region45
    $region44: #{tpu_custom_call.1} parent=1 // pred_region
      %97 = dma.done [#allocation10], 1024
    $region45: #{tpu_custom_call.1} parent=1 // pred_fallthru
      _
    // Predicated region
    $region46: #{tpu_custom_call.1} parent=1 // pred_check
      _
    $region47: #{tpu_custom_call.1} parent=1 // pred_check_branch
      %99 = sbr.rel (0) target = $region49
    $region48: #{tpu_custom_call.1} parent=1 // pred_region
      %100 = dma.done [#allocation10], 16
    $region49: #{tpu_custom_call.1} parent=1 // pred_fallthru
      _
    // Predicated region
    $region50: #{tpu_custom_call.1} parent=1 // pred_check
      _
    $region51: #{tpu_custom_call.1} parent=1 // pred_check_branch
      %102 = sbr.rel (0) target = $region53
    $region52: #{tpu_custom_call.1} parent=1 // pred_region
      %103 = dma.done [#allocation13], 16
    $region53: #{tpu_custom_call.1} parent=1 // pred_fallthru
      _
    %v105 = vld [vmem:[#allocation3] sm:$0xff]
    %v106 = vld [vmem:[#allocation3 + $0x8] sm:$0xff]
    %v107 = vpack.c.bf16 %v106, %v105
    %v108 = vld [vmem:[#allocation6] sm:$0xf]
    %v109 = vld [vmem:[#allocation6 + $0x4] sm:$0xf]
    %v110 = vld [vmem:[#allocation6 + $0x8] sm:$0xf]
    %v111 = vld [vmem:[#allocation6 + $0xc] sm:$0xf]
    %v112 = vld [vmem:[#allocation8] sm:$0x1]
    %v114 = vlaneseq
    %v115 = vshrl.u32 %v114, 7
    %v116 = vsub.s32 0, %v115
    %v117 = vrot.slane %v112, %v116
    %v123 = vunpack.c.l.b16 %v108
    %v124 = vunpack.c.l.b16 %v109
    %v125 = vunpack.c.l.b16 %v110
    %v126 = vunpack.c.l.b16 %v111
    %v127 = vpack.c.b16 %v124, %v123
    %v128 = vpack.c.b16 %v126, %v125
    %vm131 = vcmask 261120
    %v133 = vsel %vm131, %v107, 0
    %135 = vmatprep.subr.bf16.mxu0 0
    %136 = vmatpush1.bf16.msra.mxu0 %v127
    %137 = vmatprep.subr.bf16.mxu0 0
    %138 = vmatpush1.bf16.msra.mxu0 %v128
    %139 = vmatprep.subr.bf16.mxu0 0
    %140 = vmatpush1.bf16.msra.mxu0 0
    %141 = vmatprep.subr.bf16.mxu0 0
    %142 = vmatpush1.bf16.msra.mxu0 0
    %143 = vmatprep.subr.bf16.mxu0 0
    %144 = vmatpush1.bf16.msra.mxu0 0
    %145 = vmatprep.subr.bf16.mxu0 0
    %146 = vmatpush1.bf16.msra.mxu0 0
    %147 = vmatprep.subr.bf16.mxu0 0
    %148 = vmatpush1.bf16.msra.mxu0 0
    %149 = vmatprep.subr.bf16.mxu0 0
    %150 = vmatpush1.bf16.msra.mxu0 0
    %151 = vmatprep.subr.bf16.mxu0 0
    %152 = vmatpush1.bf16.msra.mxu0 0
    %153 = vmatprep.subr.bf16.mxu0 0
    %154 = vmatpush1.bf16.msra.mxu0 0
    %155 = vmatprep.subr.bf16.mxu0 0
    %156 = vmatpush1.bf16.msra.mxu0 0
    %157 = vmatprep.subr.bf16.mxu0 0
    %158 = vmatpush1.bf16.msra.mxu0 0
    %159 = vmatprep.subr.bf16.mxu0 0
    %160 = vmatpush1.bf16.msra.mxu0 0
    %161 = vmatprep.subr.bf16.mxu0 0
    %162 = vmatpush1.bf16.msra.mxu0 0
    %163 = vmatprep.subr.bf16.mxu0 0
    %164 = vmatpush1.bf16.msra.mxu0 0
    %165 = vmatprep.subr.bf16.mxu0 0
    %166 = vmatpush1.bf16.msra.mxu0 0
    %167 = vmatprep.mubr.bf16.mxu0 0
    %168 = vmatmul.mubr.bf16.gmra.mrb[0].mxu0 %v133
    %v169 = vpop.f32.mrb[0].mxu0
    %v170 = vadd.f32 %v117, %v169
    %v171 = vpop.f32.mrb[0].mxu0
    %v172 = vpop.f32.mrb[0].mxu0
    %v173 = vadd.f32 %v117, %v172
    %v174 = vpop.f32.mrb[0].mxu0
    %175 = vdwg.mxu0
    %v176 = vmax.f32 %v170, 0.0
    %v177 = vmax.f32 %v173, 0.0
    %v178 = vpack.c.bf16 %v177, %v176
    %v179 = vld [vmem:[#allocation9] sm:$0xf]
    %v180 = vld [vmem:[#allocation9 + $0x4] sm:$0xf]
    %v181 = vld [vmem:[#allocation9 + $0x8] sm:$0xf]
    %v182 = vld [vmem:[#allocation9 + $0xc] sm:$0xf]
    %v183 = vld [vmem:[#allocation9 + $0x10] sm:$0xf]
    %v184 = vld [vmem:[#allocation9 + $0x14] sm:$0xf]
    %v185 = vld [vmem:[#allocation9 + $0x18] sm:$0xf]
    %v186 = vld [vmem:[#allocation9 + $0x1c] sm:$0xf]
    %v187 = vld [vmem:[#allocation9 + $0x20] sm:$0xf]
    %v188 = vld [vmem:[#allocation9 + $0x24] sm:$0xf]
    %v189 = vld [vmem:[#allocation9 + $0x28] sm:$0xf]
    %v190 = vld [vmem:[#allocation9 + $0x2c] sm:$0xf]
    %v191 = vld [vmem:[#allocation9 + $0x30] sm:$0xf]
    %v192 = vld [vmem:[#allocation9 + $0x34] sm:$0xf]
    %v193 = vld [vmem:[#allocation9 + $0x38] sm:$0xf]
    %v194 = vld [vmem:[#allocation9 + $0x3c] sm:$0xf]
    %v195 = vld [vmem:[#allocation11] sm:$0x1]
    %v197 = vlaneseq
    %v198 = vshrl.u32 %v197, 7
    %v199 = vsub.s32 0, %v198
    %v200 = vrot.slane %v195, %v199
    %v218 = vunpack.c.l.b16 %v179
    %v219 = vunpack.c.l.b16 %v180
    %v220 = vunpack.c.l.b16 %v181
    %v221 = vunpack.c.l.b16 %v182
    %v222 = vunpack.c.l.b16 %v183
    %v223 = vunpack.c.l.b16 %v184
    %v224 = vunpack.c.l.b16 %v185
    %v225 = vunpack.c.l.b16 %v186
    %v226 = vunpack.c.l.b16 %v187
    %v227 = vunpack.c.l.b16 %v188
    %v228 = vunpack.c.l.b16 %v189
    %v229 = vunpack.c.l.b16 %v190
    %v230 = vunpack.c.l.b16 %v191
    %v231 = vunpack.c.l.b16 %v192
    %v232 = vunpack.c.l.b16 %v193
    %v233 = vunpack.c.l.b16 %v194
    %v234 = vpack.c.b16 %v219, %v218
    %v235 = vpack.c.b16 %v221, %v220
    %v236 = vpack.c.b16 %v223, %v222
    %v237 = vpack.c.b16 %v225, %v224
    %v238 = vpack.c.b16 %v227, %v226
    %v239 = vpack.c.b16 %v229, %v228
    %v240 = vpack.c.b16 %v231, %v230
    %v241 = vpack.c.b16 %v233, %v232
    %250 = vmatprep.subr.bf16.mxu0 0
    %251 = vmatpush1.bf16.msra.mxu0 %v234
    %252 = vmatprep.subr.bf16.mxu0 0
    %253 = vmatpush1.bf16.msra.mxu0 %v235
    %254 = vmatprep.subr.bf16.mxu0 0
    %255 = vmatpush1.bf16.msra.mxu0 %v236
    %256 = vmatprep.subr.bf16.mxu0 0
    %257 = vmatpush1.bf16.msra.mxu0 %v237
    %258 = vmatprep.subr.bf16.mxu0 0
    %259 = vmatpush1.bf16.msra.mxu0 %v238
    %260 = vmatprep.subr.bf16.mxu0 0
    %261 = vmatpush1.bf16.msra.mxu0 %v239
    %262 = vmatprep.subr.bf16.mxu0 0
    %263 = vmatpush1.bf16.msra.mxu0 %v240
    %264 = vmatprep.subr.bf16.mxu0 0
    %265 = vmatpush1.bf16.msra.mxu0 %v241
    %266 = vmatprep.subr.bf16.mxu0 0
    %267 = vmatpush1.bf16.msra.mxu0 0
    %268 = vmatprep.subr.bf16.mxu0 0
    %269 = vmatpush1.bf16.msra.mxu0 0
    %270 = vmatprep.subr.bf16.mxu0 0
    %271 = vmatpush1.bf16.msra.mxu0 0
    %272 = vmatprep.subr.bf16.mxu0 0
    %273 = vmatpush1.bf16.msra.mxu0 0
    %274 = vmatprep.subr.bf16.mxu0 0
    %275 = vmatpush1.bf16.msra.mxu0 0
    %276 = vmatprep.subr.bf16.mxu0 0
    %277 = vmatpush1.bf16.msra.mxu0 0
    %278 = vmatprep.subr.bf16.mxu0 0
    %279 = vmatpush1.bf16.msra.mxu0 0
    %280 = vmatprep.subr.bf16.mxu0 0
    %281 = vmatpush1.bf16.msra.mxu0 0
    %282 = vmatprep.mubr.bf16.mxu0 0
    %283 = vmatmul.mubr.bf16.gmra.mrb[0].mxu0 %v178
    %v284 = vpop.f32.mrb[0].mxu0
    %v285 = vadd.f32 %v200, %v284
    %v286 = vpop.f32.mrb[0].mxu0
    %v287 = vpop.f32.mrb[0].mxu0
    %v288 = vadd.f32 %v200, %v287
    %v289 = vpop.f32.mrb[0].mxu0
    %290 = vdwg.mxu0
    %v291 = vmax.f32 %v285, 0.0
    %v292 = vmax.f32 %v288, 0.0
    %v293 = vld [vmem:[#allocation12] sm:$0x1]
    %v295 = vlaneseq
    %v296 = vshrl.u32 %v295, 7
    %v297 = vsub.s32 0, %v296
    %v298 = vrot.slane %v293, %v297
    %v300 = vmul.f32 %v291, %v298
    %v301 = vmul.f32 %v292, %v298
    %vm302 = vcmask 523264
    %v303 = vsel %vm302, %v300, 0.0
    %304 = vadd.xlane.f32.xlu0 %v303
    %v305 = vpop.xlane.xlu0 %304
    %v306 = vsel %vm302, %v301, 0.0
    %307 = vadd.xlane.f32.xlu0 %v306
    %v308 = vpop.xlane.xlu0 %307
    %s309 = sld [smem:[#allocation2]]
    %v310 = vstv %s309
    %v311 = vadd.f32 %v305, %v310
    %v312 = vadd.f32 %v308, %v310
    %313 = vxpose.xlu0.b32.start [1/16] %v311, 128
    %314 = vxpose.xlu0.b32.cont [2/16] %v312, 128
    %315 = vxpose.xlu0.b32.cont [3/16] 0.0, 128
    %316 = vxpose.xlu0.b32.cont [4/16] 0.0, 128
    %317 = vxpose.xlu0.b32.cont [5/16] 0.0, 128
    %318 = vxpose.xlu0.b32.cont [6/16] 0.0, 128
    %319 = vxpose.xlu0.b32.cont [7/16] 0.0, 128
    %320 = vxpose.xlu0.b32.cont [8/16] 0.0, 128
    %321 = vxpose.xlu0.b32.cont [9/16] 0.0, 128
    %322 = vxpose.xlu0.b32.cont [10/16] 0.0, 128
    %323 = vxpose.xlu0.b32.cont [11/16] 0.0, 128
    %324 = vxpose.xlu0.b32.cont [12/16] 0.0, 128
    %325 = vxpose.xlu0.b32.cont [13/16] 0.0, 128
    %326 = vxpose.xlu0.b32.cont [14/16] 0.0, 128
    %327 = vxpose.xlu0.b32.cont [15/16] 0.0, 128
    %328 = vxpose.xlu0.b32.end [16/16] 0.0, 128
    %v329 = vpop.trf.xlu0
    %v330 = vpop.trf.xlu0
    %v331 = vpop.trf.xlu0
    %v332 = vpop.trf.xlu0
    %v333 = vpop.trf.xlu0
    %v334 = vpop.trf.xlu0
    %v335 = vpop.trf.xlu0
    %v336 = vpop.trf.xlu0
    %v337 = vpop.trf.xlu0
    %v338 = vpop.trf.xlu0
    %v339 = vpop.trf.xlu0
    %v340 = vpop.trf.xlu0
    %v341 = vpop.trf.xlu0
    %v342 = vpop.trf.xlu0
    %v343 = vpop.trf.xlu0
    %v344 = vpop.trf.xlu0
    %vm345 = vcmask 122880
    %346 = vst.msk [vmem:[#allocation14] sm:$0x1] %vm345, %v329
    // Predicated region
    $region54: #{tpu_custom_call.1} parent=1 // pred_check
      _
    $region55: #{tpu_custom_call.1} parent=1 // pred_check_branch
      %348 = sbr.rel (0) target = $region57
    $region56: #{tpu_custom_call.1} parent=1 // pred_region
      %s350 = ssub.s32 16, 16
      %351 = vsyncadd [#allocation5], %s350
      %s353 = sshll.u32 [#allocation14], 4
      %s354 = int_to_ptr.vmem [resolvable:$true] %s353
      %356 = dma.vmem_to_hbm [thread:$0]  %s354, 16, %s7, [#allocation5]
    $region57: #{tpu_custom_call.1} parent=1 // pred_fallthru
      _
    // Predicated region
    $region58: #{tpu_custom_call.1} parent=1 // pred_check
      _
    $region59: #{tpu_custom_call.1} parent=1 // pred_check_branch
      %358 = sbr.rel (0) target = $region61
    $region60: #{tpu_custom_call.1} parent=1 // pred_region
      %359 = dma.done [#allocation5], 16
    $region61: #{tpu_custom_call.1} parent=1 // pred_fallthru
      _
    %360 = vsyncpa [#allocation4], 1
    %361 = vsyncpa [#allocation7], 1
    %362 = vsyncpa [#allocation10], 1
    %363 = vsyncpa [#allocation13], 1
    %364 = vsyncpa [#allocation5], 1

// kernel: tpu_custom_call.1
$region0: #{tpu_custom_call.1}
  #allocation0 [shape = 'u32[]', space=smem, size = 0x4, offset = 0x4, fixed_abs, tag = 'smem constant byte address 0x4 - core index']
  #allocation1 [shape = 'u32[144,128]{1,0:T(1,128)}', space=vmem, size = 0x12000, scoped, tag = 'internal scratch']
  #allocation2 [shape = 'f32[1,1]{1,0:T(1,128)S(6)}', space=smem, size = 0x200, scoped, tag = 'scoped memory for tpu_custom_call.1']
  %s0 = inlined_call_operand.hbm [shape: f32[8,32], index: 0, kind: input, shape index: {}]
  %s1 = inlined_call_operand.hbm [shape: bf16[32,128], index: 1, kind: input, shape index: {}]
  %s2 = inlined_call_operand.hbm [shape: f32[1,128], index: 2, kind: input, shape index: {}]
  %s3 = inlined_call_operand.hbm [shape: bf16[128,64], index: 3, kind: input, shape index: {}]
  %s4 = inlined_call_operand.hbm [shape: f32[1,64], index: 4, kind: input, shape index: {}]
  %s5 = inlined_call_operand.hbm [shape: f32[1,64], index: 5, kind: input, shape index: {}]
  %s6 = inlined_call_operand.<no memory space> [shape: f32[1,1], index: 6, kind: input, shape index: {}]
  %s7 = inlined_call_operand.hbm [shape: f32[1,1,16], index: 7, kind: output, shape index: {}]
  %s8 = sld [smem:[#allocation0]]
  $region62: #{tpu_custom_call.1} parent=0
    _
  %s10 = ssub.s32 1, %s8
  %s11 = scalar_select 0, %s10, %s8
  %12 = sst [smem:[#allocation2]] %s6
  $region1: #{tpu_custom_call.1} parent=0
    #allocation3 [shape = 'u8[8192]{0}', space=vmem, size = 0x2000, scoped, tag = 'input window, operand 0, single buffered']
    #allocation4 [shape = 's32[1]{0}', space=sflag, size = 0x4, scoped, tag = 'scoped memory for tpu_custom_call.1']
    #allocation5 [shape = 's32[1]{0}', space=sflag, size = 0x4, scoped, tag = 'scoped memory for tpu_custom_call.1']
    #allocation6 [shape = 'u8[8192]{0}', space=vmem, size = 0x2000, scoped, tag = 'input window, operand 1, single buffered']
    #allocation7 [shape = 's32[1]{0}', space=sflag, size = 0x4, scoped, tag = 'scoped memory for tpu_custom_call.1']
    #allocation8 [shape = 'u8[512]{0}', space=vmem, size = 0x400, scoped, tag = 'input window, operand 2, single buffered']
    #allocation9 [shape = 'u8[32768]{0}', space=vmem, size = 0x8000, scoped, tag = 'input window, operand 3, single buffered']
    #allocation10 [shape = 's32[1]{0}', space=sflag, size = 0x4, scoped, tag = 'scoped memory for tpu_custom_call.1']
    #allocation11 [shape = 'u8[512]{0}', space=vmem, size = 0x400, scoped, tag = 'input window, operand 4, single buffered']
    #allocation12 [shape = 'u8[512]{0}', space=vmem, size = 0x400, scoped, tag = 'input window, operand 5, single buffered']
    #allocation13 [shape = 's32[1]{0}', space=sflag, size = 0x4, scoped, tag = 'scoped memory for tpu_custom_call.1']
    #allocation14 [shape = 'u8[512]{0}', space=vmem, size = 0x400, scoped, tag = 'output window, operand 0, single buffered']
    %13 = vsyncpa [#allocation4], 0
    %14 = vsyncpa [#allocation7], 0
    %15 = vsyncpa [#allocation10], 0
    %16 = vsyncpa [#allocation13], 0
    %17 = vsyncpa [#allocation5], 0
    // Predicated region
    $region2: #{tpu_custom_call.1} parent=1 // pred_check
      _
    $region3: #{tpu_custom_call.1} parent=1 // pred_check_branch
      %19 = sbr.rel (0) target = $region5
    $region4: #{tpu_custom_call.1} parent=1 // pred_region
      %s21 = ssub.s32 256, 128
      %22 = vsyncadd [#allocation4], %s21
      %s23 = sshll.u32 [#allocation3], 4
      %s24 = int_to_ptr.vmem [resolvable:$true] %s23
      %29 = dma.hbm_to_vmem [thread:$0]  %s0, 128, %s24, [#allocation4], 128, 128, 8
    $region5: #{tpu_custom_call.1} parent=1 // pred_fallthru
      _
    // Predicated region
    $region6: #{tpu_custom_call.1} parent=1 // pred_check
      _
    $region7: #{tpu_custom_call.1} parent=1 // pred_check_branch
      %31 = sbr.rel (0) target = $region9
    $region8: #{tpu_custom_call.1} parent=1 // pred_region
      %s33 = ssub.s32 256, 256
      %34 = vsyncadd [#allocation7], %s33
      %s35 = sshll.u32 [#allocation6], 4
      %s36 = int_to_ptr.vmem [resolvable:$true] %s35
      %41 = dma.hbm_to_vmem [thread:$0]  %s1, 256, %s36, [#allocation7], 64, 64, 4
    $region9: #{tpu_custom_call.1} parent=1 // pred_fallthru
      _
    // Predicated region
    $region10: #{tpu_custom_call.1} parent=1 // pred_check
      _
    $region11: #{tpu_custom_call.1} parent=1 // pred_check_branch
      %43 = sbr.rel (0) target = $region13
    $region12: #{tpu_custom_call.1} parent=1 // pred_region
      %s45 = ssub.s32 16, 16
      %46 = vsyncadd [#allocation7], %s45
      %s48 = sshll.u32 [#allocation8], 4
      %s49 = int_to_ptr.vmem [resolvable:$true] %s48
      %51 = dma.hbm_to_vmem [thread:$0]  %s2, 16, %s49, [#allocation7]
    $region13: #{tpu_custom_call.1} parent=1 // pred_fallthru
      _
    // Predicated region
    $region14: #{tpu_custom_call.1} parent=1 // pred_check
      _
    $region15: #{tpu_custom_call.1} parent=1 // pred_check_branch
      %53 = sbr.rel (0) target = $region17
    $region16: #{tpu_custom_call.1} parent=1 // pred_region
      %s55 = ssub.s32 1024, 1024
      %56 = vsyncadd [#allocation10], %s55
      %s57 = sshll.u32 [#allocation9], 4
      %s58 = int_to_ptr.vmem [resolvable:$true] %s57
      %63 = dma.hbm_to_vmem [thread:$0]  %s3, 1024, %s58, [#allocation10], 64, 64, 4
    $region17: #{tpu_custom_call.1} parent=1 // pred_fallthru
      _
    // Predicated region
    $region18: #{tpu_custom_call.1} parent=1 // pred_check
      _
    $region19: #{tpu_custom_call.1} parent=1 // pred_check_branch
      %65 = sbr.rel (0) target = $region21
    $region20: #{tpu_custom_call.1} parent=1 // pred_region
      %s67 = ssub.s32 16, 16
      %68 = vsyncadd [#allocation10], %s67
      %s70 = sshll.u32 [#allocation11], 4
      %s71 = int_to_ptr.vmem [resolvable:$true] %s70
      %73 = dma.hbm_to_vmem [thread:$0]  %s4, 16, %s71, [#allocation10]
    $region21: #{tpu_custom_call.1} parent=1 // pred_fallthru
      _
    // Predicated region
    $region22: #{tpu_custom_call.1} parent=1 // pred_check
      _
    $region23: #{tpu_custom_call.1} parent=1 // pred_check_branch
      %75 = sbr.rel (0) target = $region25
    $region24: #{tpu_custom_call.1} parent=1 // pred_region
      %s77 = ssub.s32 16, 16
      %78 = vsyncadd [#allocation13], %s77
      %s80 = sshll.u32 [#allocation12], 4
      %s81 = int_to_ptr.vmem [resolvable:$true] %s80
      %83 = dma.hbm_to_vmem [thread:$0]  %s5, 16, %s81, [#allocation13]
    $region25: #{tpu_custom_call.1} parent=1 // pred_fallthru
      _
    // Predicated region
    $region26: #{tpu_custom_call.1} parent=1 // pred_check
      _
    $region27: #{tpu_custom_call.1} parent=1 // pred_check_branch
      %85 = sbr.rel (0) target = $region29
    $region28: #{tpu_custom_call.1} parent=1 // pred_region
      _
    $region29: #{tpu_custom_call.1} parent=1 // pred_fallthru
      _
    // Predicated region
    $region30: #{tpu_custom_call.1} parent=1 // pred_check
      _
    $region31: #{tpu_custom_call.1} parent=1 // pred_check_branch
      %87 = sbr.rel (0) target = $region33
    $region32: #{tpu_custom_call.1} parent=1 // pred_region
      %88 = dma.done [#allocation4], 256
    $region33: #{tpu_custom_call.1} parent=1 // pred_fallthru
      _
    // Predicated region
    $region34: #{tpu_custom_call.1} parent=1 // pred_check
      _
    $region35: #{tpu_custom_call.1} parent=1 // pred_check_branch
      %90 = sbr.rel (0) target = $region37
    $region36: #{tpu_custom_call.1} parent=1 // pred_region
      %91 = dma.done [#allocation7], 256
    $region37: #{tpu_custom_call.1} parent=1 // pred_fallthru
      _
    // Predicated region
    $region38: #{tpu_custom_call.1} parent=1 // pred_check
      _
    $region39: #{tpu_custom_call.1} parent=1 // pred_check_branch
      %93 = sbr.rel (0) target = $region41
    $region40: #{tpu_custom_call.1} parent=1 // pred_region
      %94 = dma.done [#allocation7], 16
    $region41: #{tpu_custom_call.1} parent=1 // pred_fallthru
      _
    // Predicated region
    $region42: #{tpu_custom_call.1} parent=1 // pred_check
      _
    $region43: #{tpu_custom_call.1} parent=1 // pred_check_branch
      %96 = sbr.rel (0) target = $region45
    $region44: #{tpu_custom_call.1} parent=1 // pred_region
      %97 = dma.done [#allocation10], 1024
    $region45: #{tpu_custom_call.1} parent=1 // pred_fallthru
      _
    // Predicated region
    $region46: #{tpu_custom_call.1} parent=1 // pred_check
      _
    $region47: #{tpu_custom_call.1} parent=1 // pred_check_branch
      %99 = sbr.rel (0) target = $region49
    $region48: #{tpu_custom_call.1} parent=1 // pred_region
      %100 = dma.done [#allocation10], 16
    $region49: #{tpu_custom_call.1} parent=1 // pred_fallthru
      _
    // Predicated region
    $region50: #{tpu_custom_call.1} parent=1 // pred_check
      _
    $region51: #{tpu_custom_call.1} parent=1 // pred_check_branch
      %102 = sbr.rel (0) target = $region53
    $region52: #{tpu_custom_call.1} parent=1 // pred_region
      %103 = dma.done [#allocation13], 16
    $region53: #{tpu_custom_call.1} parent=1 // pred_fallthru
      _
    %v105 = vld [vmem:[#allocation3] sm:$0xff]
    %v106 = vld [vmem:[#allocation3 + $0x8] sm:$0xff]
    %v107 = vpack.c.bf16 %v106, %v105
    %v108 = vld [vmem:[#allocation6] sm:$0xf]
    %v109 = vld [vmem:[#allocation6 + $0x4] sm:$0xf]
    %v110 = vld [vmem:[#allocation6 + $0x8] sm:$0xf]
    %v111 = vld [vmem:[#allocation6 + $0xc] sm:$0xf]
    %v112 = vld [vmem:[#allocation8] sm:$0x1]
    %v114 = vlaneseq
    %v115 = vshrl.u32 %v114, 7
    %v116 = vsub.s32 0, %v115
    %v117 = vrot.slane %v112, %v116
    %v123 = vunpack.c.l.b16 %v108
    %v124 = vunpack.c.l.b16 %v109
    %v125 = vunpack.c.l.b16 %v110
    %v126 = vunpack.c.l.b16 %v111
    %v127 = vpack.c.b16 %v124, %v123
    %v128 = vpack.c.b16 %v126, %v125
    %vm131 = vcmask 261120
    %v133 = vsel %vm131, %v107, 0
    %135 = vmatprep.subr.bf16.mxu0 0
    %136 = vmatpush1.bf16.msra.mxu0 %v127
    %137 = vmatprep.subr.bf16.mxu0 0
    %138 = vmatpush1.bf16.msra.mxu0 %v128
    %139 = vmatprep.subr.bf16.mxu0 0
    %140 = vmatpush1.bf16.msra.mxu0 0
    %141 = vmatprep.subr.bf16.mxu0 0
    %142 = vmatpush1.bf16.msra.mxu0 0
    %143 = vmatprep.subr.bf16.mxu0 0
    %144 = vmatpush1.bf16.msra.mxu0 0
    %145 = vmatprep.subr.bf16.mxu0 0
    %146 = vmatpush1.bf16.msra.mxu0 0
    %147 = vmatprep.subr.bf16.mxu0 0
    %148 = vmatpush1.bf16.msra.mxu0 0
    %149 = vmatprep.subr.bf16.mxu0 0
    %150 = vmatpush1.bf16.msra.mxu0 0
    %151 = vmatprep.subr.bf16.mxu0 0
    %152 = vmatpush1.bf16.msra.mxu0 0
    %153 = vmatprep.subr.bf16.mxu0 0
    %154 = vmatpush1.bf16.msra.mxu0 0
    %155 = vmatprep.subr.bf16.mxu0 0
    %156 = vmatpush1.bf16.msra.mxu0 0
    %157 = vmatprep.subr.bf16.mxu0 0
    %158 = vmatpush1.bf16.msra.mxu0 0
    %159 = vmatprep.subr.bf16.mxu0 0
    %160 = vmatpush1.bf16.msra.mxu0 0
    %161 = vmatprep.subr.bf16.mxu0 0
    %162 = vmatpush1.bf16.msra.mxu0 0
    %163 = vmatprep.subr.bf16.mxu0 0
    %164 = vmatpush1.bf16.msra.mxu0 0
    %165 = vmatprep.subr.bf16.mxu0 0
    %166 = vmatpush1.bf16.msra.mxu0 0
    %167 = vmatprep.mubr.bf16.mxu0 0
    %168 = vmatmul.mubr.bf16.gmra.mrb[0].mxu0 %v133
    %v169 = vpop.f32.mrb[0].mxu0
    %v170 = vadd.f32 %v117, %v169
    %v171 = vpop.f32.mrb[0].mxu0
    %v172 = vpop.f32.mrb[0].mxu0
    %v173 = vadd.f32 %v117, %v172
    %v174 = vpop.f32.mrb[0].mxu0
    %175 = vdwg.mxu0
    %v176 = vmax.f32 %v170, 0.0
    %v177 = vmax.f32 %v173, 0.0
    %v178 = vpack.c.bf16 %v177, %v176
    %v179 = vld [vmem:[#allocation9] sm:$0xf]
    %v180 = vld [vmem:[#allocation9 + $0x4] sm:$0xf]
    %v181 = vld [vmem:[#allocation9 + $0x8] sm:$0xf]
    %v182 = vld [vmem:[#allocation9 + $0xc] sm:$0xf]
    %v183 = vld [vmem:[#allocation9 + $0x10] sm:$0xf]
    %v184 = vld [vmem:[#allocation9 + $0x14] sm:$0xf]
    %v185 = vld [vmem:[#allocation9 + $0x18] sm:$0xf]
    %v186 = vld [vmem:[#allocation9 + $0x1c] sm:$0xf]
    %v187 = vld [vmem:[#allocation9 + $0x20] sm:$0xf]
    %v188 = vld [vmem:[#allocation9 + $0x24] sm:$0xf]
    %v189 = vld [vmem:[#allocation9 + $0x28] sm:$0xf]
    %v190 = vld [vmem:[#allocation9 + $0x2c] sm:$0xf]
    %v191 = vld [vmem:[#allocation9 + $0x30] sm:$0xf]
    %v192 = vld [vmem:[#allocation9 + $0x34] sm:$0xf]
    %v193 = vld [vmem:[#allocation9 + $0x38] sm:$0xf]
    %v194 = vld [vmem:[#allocation9 + $0x3c] sm:$0xf]
    %v195 = vld [vmem:[#allocation11] sm:$0x1]
    %v197 = vlaneseq
    %v198 = vshrl.u32 %v197, 7
    %v199 = vsub.s32 0, %v198
    %v200 = vrot.slane %v195, %v199
    %v218 = vunpack.c.l.b16 %v179
    %v219 = vunpack.c.l.b16 %v180
    %v220 = vunpack.c.l.b16 %v181
    %v221 = vunpack.c.l.b16 %v182
    %v222 = vunpack.c.l.b16 %v183
    %v223 = vunpack.c.l.b16 %v184
    %v224 = vunpack.c.l.b16 %v185
    %v225 = vunpack.c.l.b16 %v186
    %v226 = vunpack.c.l.b16 %v187
    %v227 = vunpack.c.l.b16 %v188
    %v228 = vunpack.c.l.b16 %v189
    %v229 = vunpack.c.l.b16 %v190
    %v230 = vunpack.c.l.b16 %v191
    %v231 = vunpack.c.l.b16 %v192
    %v232 = vunpack.c.l.b16 %v193
    %v233 = vunpack.c.l.b16 %v194
    %v234 = vpack.c.b16 %v219, %v218
    %v235 = vpack.c.b16 %v221, %v220
    %v236 = vpack.c.b16 %v223, %v222
    %v237 = vpack.c.b16 %v225, %v224
    %v238 = vpack.c.b16 %v227, %v226
    %v239 = vpack.c.b16 %v229, %v228
    %v240 = vpack.c.b16 %v231, %v230
    %v241 = vpack.c.b16 %v233, %v232
    %250 = vmatprep.subr.bf16.mxu0 0
    %251 = vmatpush1.bf16.msra.mxu0 %v234
    %252 = vmatprep.subr.bf16.mxu0 0
    %253 = vmatpush1.bf16.msra.mxu0 %v235
    %254 = vmatprep.subr.bf16.mxu0 0
    %255 = vmatpush1.bf16.msra.mxu0 %v236
    %256 = vmatprep.subr.bf16.mxu0 0
    %257 = vmatpush1.bf16.msra.mxu0 %v237
    %258 = vmatprep.subr.bf16.mxu0 0
    %259 = vmatpush1.bf16.msra.mxu0 %v238
    %260 = vmatprep.subr.bf16.mxu0 0
    %261 = vmatpush1.bf16.msra.mxu0 %v239
    %262 = vmatprep.subr.bf16.mxu0 0
    %263 = vmatpush1.bf16.msra.mxu0 %v240
    %264 = vmatprep.subr.bf16.mxu0 0
    %265 = vmatpush1.bf16.msra.mxu0 %v241
    %266 = vmatprep.subr.bf16.mxu0 0
    %267 = vmatpush1.bf16.msra.mxu0 0
    %268 = vmatprep.subr.bf16.mxu0 0
    %269 = vmatpush1.bf16.msra.mxu0 0
    %270 = vmatprep.subr.bf16.mxu0 0
    %271 = vmatpush1.bf16.msra.mxu0 0
    %272 = vmatprep.subr.bf16.mxu0 0
    %273 = vmatpush1.bf16.msra.mxu0 0
    %274 = vmatprep.subr.bf16.mxu0 0
    %275 = vmatpush1.bf16.msra.mxu0 0
    %276 = vmatprep.subr.bf16.mxu0 0
    %277 = vmatpush1.bf16.msra.mxu0 0
    %278 = vmatprep.subr.bf16.mxu0 0
    %279 = vmatpush1.bf16.msra.mxu0 0
    %280 = vmatprep.subr.bf16.mxu0 0
    %281 = vmatpush1.bf16.msra.mxu0 0
    %282 = vmatprep.mubr.bf16.mxu0 0
    %283 = vmatmul.mubr.bf16.gmra.mrb[0].mxu0 %v178
    %v284 = vpop.f32.mrb[0].mxu0
    %v285 = vadd.f32 %v200, %v284
    %v286 = vpop.f32.mrb[0].mxu0
    %v287 = vpop.f32.mrb[0].mxu0
    %v288 = vadd.f32 %v200, %v287
    %v289 = vpop.f32.mrb[0].mxu0
    %290 = vdwg.mxu0
    %v291 = vmax.f32 %v285, 0.0
    %v292 = vmax.f32 %v288, 0.0
    %v293 = vld [vmem:[#allocation12] sm:$0x1]
    %v295 = vlaneseq
    %v296 = vshrl.u32 %v295, 7
    %v297 = vsub.s32 0, %v296
    %v298 = vrot.slane %v293, %v297
    %v300 = vmul.f32 %v291, %v298
    %v301 = vmul.f32 %v292, %v298
    %vm302 = vcmask 523264
    %v303 = vsel %vm302, %v300, 0.0
    %304 = vadd.xlane.f32.xlu0 %v303
    %v305 = vpop.xlane.xlu0 %304
    %v306 = vsel %vm302, %v301, 0.0
    %307 = vadd.xlane.f32.xlu0 %v306
    %v308 = vpop.xlane.xlu0 %307
    %s309 = sld [smem:[#allocation2]]
    %v310 = vstv %s309
    %v311 = vadd.f32 %v305, %v310
    %v312 = vadd.f32 %v308, %v310
    %v315 = vlaneseq
    %v316 = vand.u32 %v315, 127
    %v317 = vlaneseq
    %v318 = vshrl.u32 %v317, 7
    %v319 = vsub.s32 %v316, %v318
    %v320 = vrot.slane %v311, %v319
    %v321 = vadd.s32 %v316, 4294967288
    %v322 = vlaneseq
    %v323 = vshrl.u32 %v322, 7
    %v324 = vsub.s32 %v321, %v323
    %v325 = vrot.slane %v312, %v324
    %vm326 = vcmask 130112
    %v327 = vsel %vm326, %v325, %v320
    %vm329 = vcmask 122880
    %330 = vst.msk [vmem:[#allocation14] sm:$0x1] %vm329, %v327
    // Predicated region
    $region54: #{tpu_custom_call.1} parent=1 // pred_check
      _
    $region55: #{tpu_custom_call.1} parent=1 // pred_check_branch
      %332 = sbr.rel (0) target = $region57
    $region56: #{tpu_custom_call.1} parent=1 // pred_region
      %s334 = ssub.s32 16, 16
      %335 = vsyncadd [#allocation5], %s334
      %s337 = sshll.u32 [#allocation14], 4
      %s338 = int_to_ptr.vmem [resolvable:$true] %s337
      %340 = dma.vmem_to_hbm [thread:$0]  %s338, 16, %s7, [#allocation5]
    $region57: #{tpu_custom_call.1} parent=1 // pred_fallthru
      _
    // Predicated region
    $region58: #{tpu_custom_call.1} parent=1 // pred_check
      _
    $region59: #{tpu_custom_call.1} parent=1 // pred_check_branch
      %342 = sbr.rel (0) target = $region61
    $region60: #{tpu_custom_call.1} parent=1 // pred_region
      %343 = dma.done [#allocation5], 16
    $region61: #{tpu_custom_call.1} parent=1 // pred_fallthru
      _
    %344 = vsyncpa [#allocation4], 1
    %345 = vsyncpa [#allocation7], 1
    %346 = vsyncpa [#allocation10], 1
    %347 = vsyncpa [#allocation13], 1
    %348 = vsyncpa [#allocation5], 1

// kernel: tpu_custom_call.1
$region0: #{tpu_custom_call.1}
  #allocation0 [shape = 'u32[]', space=smem, size = 0x4, offset = 0x4, fixed_abs, tag = 'smem constant byte address 0x4 - core index']
  #allocation1 [shape = 'u32[144,128]{1,0:T(1,128)}', space=vmem, size = 0x12000, scoped, tag = 'internal scratch']
  #allocation2 [shape = 'f32[1,1]{1,0:T(1,128)S(6)}', space=smem, size = 0x200, scoped, tag = 'scoped memory for tpu_custom_call.1']
  %s0 = inlined_call_operand.hbm [shape: f32[8,32], index: 0, kind: input, shape index: {}]
  %s1 = inlined_call_operand.hbm [shape: bf16[32,128], index: 1, kind: input, shape index: {}]
  %s2 = inlined_call_operand.hbm [shape: f32[1,128], index: 2, kind: input, shape index: {}]
  %s3 = inlined_call_operand.hbm [shape: bf16[128,64], index: 3, kind: input, shape index: {}]
  %s4 = inlined_call_operand.hbm [shape: f32[1,64], index: 4, kind: input, shape index: {}]
  %s5 = inlined_call_operand.hbm [shape: f32[1,64], index: 5, kind: input, shape index: {}]
  %s6 = inlined_call_operand.<no memory space> [shape: f32[1,1], index: 6, kind: input, shape index: {}]
  %s7 = inlined_call_operand.hbm [shape: f32[16,1], index: 7, kind: output, shape index: {}]
  %s8 = sld [smem:[#allocation0]]
  $region62: #{tpu_custom_call.1} parent=0
    _
  %s10 = ssub.s32 1, %s8
  %s11 = scalar_select 0, %s10, %s8
  %12 = sst [smem:[#allocation2]] %s6
  $region1: #{tpu_custom_call.1} parent=0
    #allocation3 [shape = 'u8[8192]{0}', space=vmem, size = 0x2000, scoped, tag = 'input window, operand 0, single buffered']
    #allocation4 [shape = 's32[1]{0}', space=sflag, size = 0x4, scoped, tag = 'scoped memory for tpu_custom_call.1']
    #allocation5 [shape = 's32[1]{0}', space=sflag, size = 0x4, scoped, tag = 'scoped memory for tpu_custom_call.1']
    #allocation6 [shape = 'u8[8192]{0}', space=vmem, size = 0x2000, scoped, tag = 'input window, operand 1, single buffered']
    #allocation7 [shape = 's32[1]{0}', space=sflag, size = 0x4, scoped, tag = 'scoped memory for tpu_custom_call.1']
    #allocation8 [shape = 'u8[512]{0}', space=vmem, size = 0x400, scoped, tag = 'input window, operand 2, single buffered']
    #allocation9 [shape = 'u8[32768]{0}', space=vmem, size = 0x8000, scoped, tag = 'input window, operand 3, single buffered']
    #allocation10 [shape = 's32[1]{0}', space=sflag, size = 0x4, scoped, tag = 'scoped memory for tpu_custom_call.1']
    #allocation11 [shape = 'u8[512]{0}', space=vmem, size = 0x400, scoped, tag = 'input window, operand 4, single buffered']
    #allocation12 [shape = 'u8[512]{0}', space=vmem, size = 0x400, scoped, tag = 'input window, operand 5, single buffered']
    #allocation13 [shape = 's32[1]{0}', space=sflag, size = 0x4, scoped, tag = 'scoped memory for tpu_custom_call.1']
    #allocation14 [shape = 'u8[8192]{0}', space=vmem, size = 0x2000, scoped, tag = 'output window, operand 0, single buffered']
    %13 = vsyncpa [#allocation4], 0
    %14 = vsyncpa [#allocation7], 0
    %15 = vsyncpa [#allocation10], 0
    %16 = vsyncpa [#allocation13], 0
    %17 = vsyncpa [#allocation5], 0
    // Predicated region
    $region2: #{tpu_custom_call.1} parent=1 // pred_check
      _
    $region3: #{tpu_custom_call.1} parent=1 // pred_check_branch
      %19 = sbr.rel (0) target = $region5
    $region4: #{tpu_custom_call.1} parent=1 // pred_region
      %s21 = ssub.s32 256, 128
      %22 = vsyncadd [#allocation4], %s21
      %s23 = sshll.u32 [#allocation3], 4
      %s24 = int_to_ptr.vmem [resolvable:$true] %s23
      %29 = dma.hbm_to_vmem [thread:$0]  %s0, 128, %s24, [#allocation4], 128, 128, 8
    $region5: #{tpu_custom_call.1} parent=1 // pred_fallthru
      _
    // Predicated region
    $region6: #{tpu_custom_call.1} parent=1 // pred_check
      _
    $region7: #{tpu_custom_call.1} parent=1 // pred_check_branch
      %31 = sbr.rel (0) target = $region9
    $region8: #{tpu_custom_call.1} parent=1 // pred_region
      %s33 = ssub.s32 256, 256
      %34 = vsyncadd [#allocation7], %s33
      %s35 = sshll.u32 [#allocation6], 4
      %s36 = int_to_ptr.vmem [resolvable:$true] %s35
      %41 = dma.hbm_to_vmem [thread:$0]  %s1, 256, %s36, [#allocation7], 64, 64, 4
    $region9: #{tpu_custom_call.1} parent=1 // pred_fallthru
      _
    // Predicated region
    $region10: #{tpu_custom_call.1} parent=1 // pred_check
      _
    $region11: #{tpu_custom_call.1} parent=1 // pred_check_branch
      %43 = sbr.rel (0) target = $region13
    $region12: #{tpu_custom_call.1} parent=1 // pred_region
      %s45 = ssub.s32 16, 16
      %46 = vsyncadd [#allocation7], %s45
      %s48 = sshll.u32 [#allocation8], 4
      %s49 = int_to_ptr.vmem [resolvable:$true] %s48
      %51 = dma.hbm_to_vmem [thread:$0]  %s2, 16, %s49, [#allocation7]
    $region13: #{tpu_custom_call.1} parent=1 // pred_fallthru
      _
    // Predicated region
    $region14: #{tpu_custom_call.1} parent=1 // pred_check
      _
    $region15: #{tpu_custom_call.1} parent=1 // pred_check_branch
      %53 = sbr.rel (0) target = $region17
    $region16: #{tpu_custom_call.1} parent=1 // pred_region
      %s55 = ssub.s32 1024, 1024
      %56 = vsyncadd [#allocation10], %s55
      %s57 = sshll.u32 [#allocation9], 4
      %s58 = int_to_ptr.vmem [resolvable:$true] %s57
      %63 = dma.hbm_to_vmem [thread:$0]  %s3, 1024, %s58, [#allocation10], 64, 64, 4
    $region17: #{tpu_custom_call.1} parent=1 // pred_fallthru
      _
    // Predicated region
    $region18: #{tpu_custom_call.1} parent=1 // pred_check
      _
    $region19: #{tpu_custom_call.1} parent=1 // pred_check_branch
      %65 = sbr.rel (0) target = $region21
    $region20: #{tpu_custom_call.1} parent=1 // pred_region
      %s67 = ssub.s32 16, 16
      %68 = vsyncadd [#allocation10], %s67
      %s70 = sshll.u32 [#allocation11], 4
      %s71 = int_to_ptr.vmem [resolvable:$true] %s70
      %73 = dma.hbm_to_vmem [thread:$0]  %s4, 16, %s71, [#allocation10]
    $region21: #{tpu_custom_call.1} parent=1 // pred_fallthru
      _
    // Predicated region
    $region22: #{tpu_custom_call.1} parent=1 // pred_check
      _
    $region23: #{tpu_custom_call.1} parent=1 // pred_check_branch
      %75 = sbr.rel (0) target = $region25
    $region24: #{tpu_custom_call.1} parent=1 // pred_region
      %s77 = ssub.s32 16, 16
      %78 = vsyncadd [#allocation13], %s77
      %s80 = sshll.u32 [#allocation12], 4
      %s81 = int_to_ptr.vmem [resolvable:$true] %s80
      %83 = dma.hbm_to_vmem [thread:$0]  %s5, 16, %s81, [#allocation13]
    $region25: #{tpu_custom_call.1} parent=1 // pred_fallthru
      _
    // Predicated region
    $region26: #{tpu_custom_call.1} parent=1 // pred_check
      _
    $region27: #{tpu_custom_call.1} parent=1 // pred_check_branch
      %85 = sbr.rel (0) target = $region29
    $region28: #{tpu_custom_call.1} parent=1 // pred_region
      _
    $region29: #{tpu_custom_call.1} parent=1 // pred_fallthru
      _
    // Predicated region
    $region30: #{tpu_custom_call.1} parent=1 // pred_check
      _
    $region31: #{tpu_custom_call.1} parent=1 // pred_check_branch
      %87 = sbr.rel (0) target = $region33
    $region32: #{tpu_custom_call.1} parent=1 // pred_region
      %88 = dma.done [#allocation4], 256
    $region33: #{tpu_custom_call.1} parent=1 // pred_fallthru
      _
    // Predicated region
    $region34: #{tpu_custom_call.1} parent=1 // pred_check
      _
    $region35: #{tpu_custom_call.1} parent=1 // pred_check_branch
      %90 = sbr.rel (0) target = $region37
    $region36: #{tpu_custom_call.1} parent=1 // pred_region
      %91 = dma.done [#allocation7], 256
    $region37: #{tpu_custom_call.1} parent=1 // pred_fallthru
      _
    // Predicated region
    $region38: #{tpu_custom_call.1} parent=1 // pred_check
      _
    $region39: #{tpu_custom_call.1} parent=1 // pred_check_branch
      %93 = sbr.rel (0) target = $region41
    $region40: #{tpu_custom_call.1} parent=1 // pred_region
      %94 = dma.done [#allocation7], 16
    $region41: #{tpu_custom_call.1} parent=1 // pred_fallthru
      _
    // Predicated region
    $region42: #{tpu_custom_call.1} parent=1 // pred_check
      _
    $region43: #{tpu_custom_call.1} parent=1 // pred_check_branch
      %96 = sbr.rel (0) target = $region45
    $region44: #{tpu_custom_call.1} parent=1 // pred_region
      %97 = dma.done [#allocation10], 1024
    $region45: #{tpu_custom_call.1} parent=1 // pred_fallthru
      _
    // Predicated region
    $region46: #{tpu_custom_call.1} parent=1 // pred_check
      _
    $region47: #{tpu_custom_call.1} parent=1 // pred_check_branch
      %99 = sbr.rel (0) target = $region49
    $region48: #{tpu_custom_call.1} parent=1 // pred_region
      %100 = dma.done [#allocation10], 16
    $region49: #{tpu_custom_call.1} parent=1 // pred_fallthru
      _
    // Predicated region
    $region50: #{tpu_custom_call.1} parent=1 // pred_check
      _
    $region51: #{tpu_custom_call.1} parent=1 // pred_check_branch
      %102 = sbr.rel (0) target = $region53
    $region52: #{tpu_custom_call.1} parent=1 // pred_region
      %103 = dma.done [#allocation13], 16
    $region53: #{tpu_custom_call.1} parent=1 // pred_fallthru
      _
    %v105 = vld [vmem:[#allocation3] sm:$0xff]
    %v106 = vld [vmem:[#allocation3 + $0x8] sm:$0xff]
    %v107 = vpack.c.bf16 %v106, %v105
    %v108 = vld [vmem:[#allocation6] sm:$0xf]
    %v109 = vld [vmem:[#allocation6 + $0x4] sm:$0xf]
    %v110 = vld [vmem:[#allocation6 + $0x8] sm:$0xf]
    %v111 = vld [vmem:[#allocation6 + $0xc] sm:$0xf]
    %v112 = vld [vmem:[#allocation8] sm:$0x1]
    %v114 = vlaneseq
    %v115 = vshrl.u32 %v114, 7
    %v116 = vsub.s32 0, %v115
    %v117 = vrot.slane %v112, %v116
    %v123 = vunpack.c.l.b16 %v108
    %v124 = vunpack.c.l.b16 %v109
    %v125 = vunpack.c.l.b16 %v110
    %v126 = vunpack.c.l.b16 %v111
    %v127 = vpack.c.b16 %v124, %v123
    %v128 = vpack.c.b16 %v126, %v125
    %vm131 = vcmask 261120
    %v133 = vsel %vm131, %v107, 0
    %135 = vmatprep.subr.bf16.mxu0 0
    %136 = vmatpush1.bf16.msra.mxu0 %v127
    %137 = vmatprep.subr.bf16.mxu0 0
    %138 = vmatpush1.bf16.msra.mxu0 %v128
    %139 = vmatprep.subr.bf16.mxu0 0
    %140 = vmatpush1.bf16.msra.mxu0 0
    %141 = vmatprep.subr.bf16.mxu0 0
    %142 = vmatpush1.bf16.msra.mxu0 0
    %143 = vmatprep.subr.bf16.mxu0 0
    %144 = vmatpush1.bf16.msra.mxu0 0
    %145 = vmatprep.subr.bf16.mxu0 0
    %146 = vmatpush1.bf16.msra.mxu0 0
    %147 = vmatprep.subr.bf16.mxu0 0
    %148 = vmatpush1.bf16.msra.mxu0 0
    %149 = vmatprep.subr.bf16.mxu0 0
    %150 = vmatpush1.bf16.msra.mxu0 0
    %151 = vmatprep.subr.bf16.mxu0 0
    %152 = vmatpush1.bf16.msra.mxu0 0
    %153 = vmatprep.subr.bf16.mxu0 0
    %154 = vmatpush1.bf16.msra.mxu0 0
    %155 = vmatprep.subr.bf16.mxu0 0
    %156 = vmatpush1.bf16.msra.mxu0 0
    %157 = vmatprep.subr.bf16.mxu0 0
    %158 = vmatpush1.bf16.msra.mxu0 0
    %159 = vmatprep.subr.bf16.mxu0 0
    %160 = vmatpush1.bf16.msra.mxu0 0
    %161 = vmatprep.subr.bf16.mxu0 0
    %162 = vmatpush1.bf16.msra.mxu0 0
    %163 = vmatprep.subr.bf16.mxu0 0
    %164 = vmatpush1.bf16.msra.mxu0 0
    %165 = vmatprep.subr.bf16.mxu0 0
    %166 = vmatpush1.bf16.msra.mxu0 0
    %167 = vmatprep.mubr.bf16.mxu0 0
    %168 = vmatmul.mubr.bf16.gmra.mrb[0].mxu0 %v133
    %v169 = vpop.f32.mrb[0].mxu0
    %v170 = vadd.f32 %v117, %v169
    %v171 = vpop.f32.mrb[0].mxu0
    %v172 = vpop.f32.mrb[0].mxu0
    %v173 = vadd.f32 %v117, %v172
    %v174 = vpop.f32.mrb[0].mxu0
    %175 = vdwg.mxu0
    %v176 = vmax.f32 %v170, 0.0
    %v177 = vmax.f32 %v173, 0.0
    %v178 = vpack.c.bf16 %v177, %v176
    %v179 = vld [vmem:[#allocation9] sm:$0xf]
    %v180 = vld [vmem:[#allocation9 + $0x4] sm:$0xf]
    %v181 = vld [vmem:[#allocation9 + $0x8] sm:$0xf]
    %v182 = vld [vmem:[#allocation9 + $0xc] sm:$0xf]
    %v183 = vld [vmem:[#allocation9 + $0x10] sm:$0xf]
    %v184 = vld [vmem:[#allocation9 + $0x14] sm:$0xf]
    %v185 = vld [vmem:[#allocation9 + $0x18] sm:$0xf]
    %v186 = vld [vmem:[#allocation9 + $0x1c] sm:$0xf]
    %v187 = vld [vmem:[#allocation9 + $0x20] sm:$0xf]
    %v188 = vld [vmem:[#allocation9 + $0x24] sm:$0xf]
    %v189 = vld [vmem:[#allocation9 + $0x28] sm:$0xf]
    %v190 = vld [vmem:[#allocation9 + $0x2c] sm:$0xf]
    %v191 = vld [vmem:[#allocation9 + $0x30] sm:$0xf]
    %v192 = vld [vmem:[#allocation9 + $0x34] sm:$0xf]
    %v193 = vld [vmem:[#allocation9 + $0x38] sm:$0xf]
    %v194 = vld [vmem:[#allocation9 + $0x3c] sm:$0xf]
    %v195 = vld [vmem:[#allocation11] sm:$0x1]
    %v197 = vlaneseq
    %v198 = vshrl.u32 %v197, 7
    %v199 = vsub.s32 0, %v198
    %v200 = vrot.slane %v195, %v199
    %v218 = vunpack.c.l.b16 %v179
    %v219 = vunpack.c.l.b16 %v180
    %v220 = vunpack.c.l.b16 %v181
    %v221 = vunpack.c.l.b16 %v182
    %v222 = vunpack.c.l.b16 %v183
    %v223 = vunpack.c.l.b16 %v184
    %v224 = vunpack.c.l.b16 %v185
    %v225 = vunpack.c.l.b16 %v186
    %v226 = vunpack.c.l.b16 %v187
    %v227 = vunpack.c.l.b16 %v188
    %v228 = vunpack.c.l.b16 %v189
    %v229 = vunpack.c.l.b16 %v190
    %v230 = vunpack.c.l.b16 %v191
    %v231 = vunpack.c.l.b16 %v192
    %v232 = vunpack.c.l.b16 %v193
    %v233 = vunpack.c.l.b16 %v194
    %v234 = vpack.c.b16 %v219, %v218
    %v235 = vpack.c.b16 %v221, %v220
    %v236 = vpack.c.b16 %v223, %v222
    %v237 = vpack.c.b16 %v225, %v224
    %v238 = vpack.c.b16 %v227, %v226
    %v239 = vpack.c.b16 %v229, %v228
    %v240 = vpack.c.b16 %v231, %v230
    %v241 = vpack.c.b16 %v233, %v232
    %250 = vmatprep.subr.bf16.mxu0 0
    %251 = vmatpush1.bf16.msra.mxu0 %v234
    %252 = vmatprep.subr.bf16.mxu0 0
    %253 = vmatpush1.bf16.msra.mxu0 %v235
    %254 = vmatprep.subr.bf16.mxu0 0
    %255 = vmatpush1.bf16.msra.mxu0 %v236
    %256 = vmatprep.subr.bf16.mxu0 0
    %257 = vmatpush1.bf16.msra.mxu0 %v237
    %258 = vmatprep.subr.bf16.mxu0 0
    %259 = vmatpush1.bf16.msra.mxu0 %v238
    %260 = vmatprep.subr.bf16.mxu0 0
    %261 = vmatpush1.bf16.msra.mxu0 %v239
    %262 = vmatprep.subr.bf16.mxu0 0
    %263 = vmatpush1.bf16.msra.mxu0 %v240
    %264 = vmatprep.subr.bf16.mxu0 0
    %265 = vmatpush1.bf16.msra.mxu0 %v241
    %266 = vmatprep.subr.bf16.mxu0 0
    %267 = vmatpush1.bf16.msra.mxu0 0
    %268 = vmatprep.subr.bf16.mxu0 0
    %269 = vmatpush1.bf16.msra.mxu0 0
    %270 = vmatprep.subr.bf16.mxu0 0
    %271 = vmatpush1.bf16.msra.mxu0 0
    %272 = vmatprep.subr.bf16.mxu0 0
    %273 = vmatpush1.bf16.msra.mxu0 0
    %274 = vmatprep.subr.bf16.mxu0 0
    %275 = vmatpush1.bf16.msra.mxu0 0
    %276 = vmatprep.subr.bf16.mxu0 0
    %277 = vmatpush1.bf16.msra.mxu0 0
    %278 = vmatprep.subr.bf16.mxu0 0
    %279 = vmatpush1.bf16.msra.mxu0 0
    %280 = vmatprep.subr.bf16.mxu0 0
    %281 = vmatpush1.bf16.msra.mxu0 0
    %282 = vmatprep.mubr.bf16.mxu0 0
    %283 = vmatmul.mubr.bf16.gmra.mrb[0].mxu0 %v178
    %v284 = vpop.f32.mrb[0].mxu0
    %v285 = vadd.f32 %v200, %v284
    %v286 = vpop.f32.mrb[0].mxu0
    %v287 = vpop.f32.mrb[0].mxu0
    %v288 = vadd.f32 %v200, %v287
    %v289 = vpop.f32.mrb[0].mxu0
    %290 = vdwg.mxu0
    %v291 = vmax.f32 %v285, 0.0
    %v292 = vmax.f32 %v288, 0.0
    %v293 = vld [vmem:[#allocation12] sm:$0x1]
    %v295 = vlaneseq
    %v296 = vshrl.u32 %v295, 7
    %v297 = vsub.s32 0, %v296
    %v298 = vrot.slane %v293, %v297
    %v300 = vmul.f32 %v291, %v298
    %v301 = vmul.f32 %v292, %v298
    %vm302 = vcmask 523264
    %v303 = vsel %vm302, %v300, 0.0
    %304 = vadd.xlane.f32.xlu0 %v303
    %v305 = vpop.xlane.xlu0 %304
    %v306 = vsel %vm302, %v301, 0.0
    %307 = vadd.xlane.f32.xlu0 %v306
    %v308 = vpop.xlane.xlu0 %307
    %s309 = sld [smem:[#allocation2]]
    %v310 = vstv %s309
    %v311 = vadd.f32 %v305, %v310
    %v312 = vadd.f32 %v308, %v310
    %vm313 = vcmask 7168
    %314 = vst.msk [vmem:[#allocation14] sm:$0xff] %vm313, %v311
    %315 = vst.msk [vmem:[#allocation14 + $0x8] sm:$0xff] %vm313, %v312
    // Predicated region
    $region54: #{tpu_custom_call.1} parent=1 // pred_check
      _
    $region55: #{tpu_custom_call.1} parent=1 // pred_check_branch
      %317 = sbr.rel (0) target = $region57
    $region56: #{tpu_custom_call.1} parent=1 // pred_region
      %s319 = ssub.s32 256, 256
      %320 = vsyncadd [#allocation5], %s319
      %s321 = sshll.u32 [#allocation14], 4
      %s322 = int_to_ptr.vmem [resolvable:$true] %s321
      %327 = dma.vmem_to_hbm [thread:$0]  %s322, 256, %s7, [#allocation5], 128, 128, 8
    $region57: #{tpu_custom_call.1} parent=1 // pred_fallthru
      _
    // Predicated region
    $region58: #{tpu_custom_call.1} parent=1 // pred_check
      _
    $region59: #{tpu_custom_call.1} parent=1 // pred_check_branch
      %329 = sbr.rel (0) target = $region61
    $region60: #{tpu_custom_call.1} parent=1 // pred_region
      %330 = dma.done [#allocation5], 256
    $region61: #{tpu_custom_call.1} parent=1 // pred_fallthru
      _
    %331 = vsyncpa [#allocation4], 1
    %332 = vsyncpa [#allocation7], 1
    %333 = vsyncpa [#allocation10], 1
    %334 = vsyncpa [#allocation13], 1
    %335 = vsyncpa [#allocation5], 1

</llo_original>
